<compile_context>
chip_gen: v6e
topology: v6e:2x2x1
jax: 0.10.0
libtpu: 0.0.40
codegen_flags: <defaults>
</compile_context>

<pallas_src>
import functools
import math

import jax
import jax.numpy as jnp
from jax.experimental import pallas as pl
from jax.experimental.pallas import tpu as pltpu


_INV_SQRT2 = 1.0 / math.sqrt(2.0)


def _erf_poly(x):
    # Abramowitz & Stegun 7.1.26 polynomial erf approximation (|err| < 1.5e-7).
    # Built only from exp / fma / where so it is guaranteed to lower in Mosaic
    # while preserving nn.GELU()'s exact-erf semantics to ~1e-7.
    a1, a2, a3, a4, a5 = (0.254829592, -0.284496736, 1.421413741,
                          -1.453152027, 1.061405429)
    p = 0.3275911
    ax = jnp.abs(x)
    t = 1.0 / (1.0 + p * ax)
    poly = ((((a5 * t + a4) * t + a3) * t + a2) * t + a1) * t
    y = 1.0 - poly * jnp.exp(-ax * ax)
    return jnp.where(x >= 0.0, y, -y)


def _gelu_exact(x):
    # PyTorch nn.GELU() default = exact erf formulation.
    return 0.5 * x * (1.0 + _erf_poly(x * _INV_SQRT2))


def _layernorm(x, gamma, beta, eps=1e-5):
    mu = jnp.mean(x, axis=-1, keepdims=True)
    var = jnp.mean((x - mu) ** 2, axis=-1, keepdims=True)
    return (x - mu) * jax.lax.rsqrt(var + eps) * gamma + beta


def block_kernel(x_ref, g1_ref, b1_ref, wq_ref, wk_ref, wv_ref,
                 wproj_ref, bproj_ref, g2_ref, b2_ref,
                 wfc1_ref, bfc1_ref, wfc2_ref, bfc2_ref,
                 o_ref, *, num_heads, head_dim):
    x = x_ref[0].astype(jnp.float32)                      # (N, C) f32
    N, C = x.shape
    mm_dtype = wq_ref.dtype                               # bf16 matmul operands

    # ---------------- attention branch ----------------
    xn = _layernorm(x, g1_ref[0], b1_ref[0]).astype(mm_dtype)
    # softmax scale is pre-folded into w_q on the host.
    q = jnp.dot(xn, wq_ref[...], preferred_element_type=jnp.float32)   # (N, C)
    k = jnp.dot(xn, wk_ref[...], preferred_element_type=jnp.float32)
    v = jnp.dot(xn, wv_ref[...], preferred_element_type=jnp.float32)

    # (N, C) -> (heads, N, hd): leading-batch layout so both attention
    # contractions are canonical batched matmuls.
    q = q.reshape(N, num_heads, head_dim).transpose(1, 0, 2).astype(mm_dtype)
    k = k.reshape(N, num_heads, head_dim).transpose(1, 0, 2).astype(mm_dtype)
    v = v.reshape(N, num_heads, head_dim).transpose(1, 0, 2).astype(mm_dtype)

    s = jnp.einsum("hnd,hmd->hnm", q, k,
                   preferred_element_type=jnp.float32)    # (heads, N, N) f32
    s = s - jnp.max(s, axis=-1, keepdims=True)
    p = jnp.exp(s)
    p = p * pl.reciprocal(jnp.sum(p, axis=-1, keepdims=True), approx=True)

    ctx = jnp.einsum("hnm,hmd->hnd", p.astype(mm_dtype), v,
                     preferred_element_type=jnp.float32)  # (heads, N, hd) f32
    ctx = ctx.transpose(1, 0, 2).reshape(N, C)            # (N, C) head-major
    attn = jnp.dot(ctx.astype(mm_dtype), wproj_ref[...],
                   preferred_element_type=jnp.float32) + bproj_ref[0]
    x = x + attn                                          # residual 1

    # ---------------- MLP branch ----------------
    xn2 = _layernorm(x, g2_ref[0], b2_ref[0]).astype(mm_dtype)
    h1 = jnp.dot(xn2, wfc1_ref[...],
                 preferred_element_type=jnp.float32) + bfc1_ref[0]
    h1 = _gelu_exact(h1).astype(mm_dtype)
    h2 = jnp.dot(h1, wfc2_ref[...],
                 preferred_element_type=jnp.float32) + bfc2_ref[0]
    x = x + h2                                            # residual 2

    o_ref[0] = x.astype(o_ref.dtype)


def vit_block(x, params, *, num_heads, matmul_dtype=jnp.bfloat16):
    B, N, C = x.shape
    H = params["w_fc1"].shape[1]
    head_dim = C // num_heads
    scale = head_dim ** -0.5

    # Split the fused qkv weight host-side (free in XLA) so the kernel does
    # three aligned (N,C)@(C,C) matmuls instead of lane-slicing an (N,3C)
    # intermediate; fold the softmax scale into w_q. bf16 operands halve the
    # resident weight VMEM; accumulation stays f32 in-kernel.
    w_q = (params["w_qkv"][:, :C] * scale).astype(matmul_dtype)
    w_k = params["w_qkv"][:, C:2 * C].astype(matmul_dtype)
    w_v = params["w_qkv"][:, 2 * C:].astype(matmul_dtype)
    w_proj = params["w_proj"].astype(matmul_dtype)
    w_fc1 = params["w_fc1"].astype(matmul_dtype)
    w_fc2 = params["w_fc2"].astype(matmul_dtype)

    full = lambda shape: pl.BlockSpec(shape, lambda b, _n=len(shape): (0,) * _n)

    kernel = functools.partial(block_kernel, num_heads=num_heads,
                               head_dim=head_dim)
    return pl.pallas_call(
        kernel,
        out_shape=jax.ShapeDtypeStruct((B, N, C), x.dtype),
        grid_spec=pltpu.PrefetchScalarGridSpec(
            num_scalar_prefetch=0,
            grid=(B,),
            in_specs=[
                pl.BlockSpec((1, N, C), lambda b: (b, 0, 0)),   # x
                full((1, C)), full((1, C)),                     # norm1 gamma/beta
                full((C, C)), full((C, C)), full((C, C)),       # w_q / w_k / w_v
                full((C, C)), full((1, C)),                     # proj weight / bias
                full((1, C)), full((1, C)),                     # norm2 gamma/beta
                full((C, H)), full((1, H)),                     # fc1 weight / bias
                full((H, C)), full((1, C)),                     # fc2 weight / bias
            ],
            out_specs=pl.BlockSpec((1, N, C), lambda b: (b, 0, 0)),
        ),
        compiler_params=pltpu.CompilerParams(
            dimension_semantics=("parallel",),
            # Above the v5e (16 MiB) / v6e-v7x (32 MiB) scoped defaults, below
            # v7x's 64 MiB physical VMEM.
            vmem_limit_bytes=48 * 1024 * 1024,
        ),
    )(x, params["g1"], params["b1"], w_q, w_k, w_v, w_proj, params["b_proj"],
      params["g2"], params["b2"], w_fc1, params["b_fc1"], w_fc2,
      params["b_fc2"])


def reference_block(x, params, *, num_heads):
    # pure-JAX f32 reference (mirrors the PyTorch module, exact-erf GELU).
    B, N, C = x.shape
    hd = C // num_heads
    xn = _layernorm(x, params["g1"][0], params["b1"][0])
    qkv = xn @ params["w_qkv"]
    q, k, v = qkv[..., :C], qkv[..., C:2 * C], qkv[..., 2 * C:]
    q = q.reshape(B, N, num_heads, hd).transpose(0, 2, 1, 3)
    k = k.reshape(B, N, num_heads, hd).transpose(0, 2, 1, 3)
    v = v.reshape(B, N, num_heads, hd).transpose(0, 2, 1, 3)
    a = jax.nn.softmax((q @ k.transpose(0, 1, 3, 2)) * hd ** -0.5, axis=-1)
    o = (a @ v).transpose(0, 2, 1, 3).reshape(B, N, C)
    x = x + o @ params["w_proj"] + params["b_proj"][0]
    xn2 = _layernorm(x, params["g2"][0], params["b2"][0])
    h = xn2 @ params["w_fc1"] + params["b_fc1"][0]
    h = 0.5 * h * (1.0 + jax.scipy.special.erf(h * _INV_SQRT2))
    return x + h @ params["w_fc2"] + params["b_fc2"][0]


if __name__ == "__main__":
    B, N, C = 2, 8, 32
    num_heads = 4
    mlp_ratio = 4.0
    H = int(C * mlp_ratio)

    key = jax.random.PRNGKey(0)
    ks = jax.random.split(key, 8)
    params = {
        "g1": jnp.ones((1, C), jnp.float32),
        "b1": jnp.zeros((1, C), jnp.float32),
        "w_qkv": 0.05 * jax.random.normal(ks[0], (C, 3 * C), jnp.float32),
        "w_proj": 0.05 * jax.random.normal(ks[1], (C, C), jnp.float32),
        "b_proj": 0.05 * jax.random.normal(ks[2], (1, C), jnp.float32),
        "g2": jnp.ones((1, C), jnp.float32),
        "b2": jnp.zeros((1, C), jnp.float32),
        "w_fc1": 0.05 * jax.random.normal(ks[3], (C, H), jnp.float32),
        "b_fc1": 0.05 * jax.random.normal(ks[4], (1, H), jnp.float32),
        "w_fc2": 0.05 * jax.random.normal(ks[5], (H, C), jnp.float32),
        "b_fc2": 0.05 * jax.random.normal(ks[6], (1, C), jnp.float32),
    }
    x = jax.random.normal(ks[7], (B, N, C), jnp.float32)

    out = vit_block(x, params, num_heads=num_heads)
    out = jax.block_until_ready(out)

    ref = reference_block(x, params, num_heads=num_heads)
    assert out.shape == (B, N, C)
    # bf16 matmul operands (f32 accumulation) vs. a pure-f32 reference -> the
    # tolerance is loosened relative to an all-f32 kernel.
    assert jnp.allclose(out, ref, atol=5e-2, rtol=5e-2), "mismatch vs reference"

    print("KERNEL_OK")
</pallas_src>

<mosaic_0001>
module attributes {stable_mosaic.version = 11 : i64} {
  func.func @block_kernel(%arg0: i32, %arg1: memref<1x8x32xf32, #tpu.memory_space<vmem>>, %arg2: memref<1x32xf32, #tpu.memory_space<vmem>>, %arg3: memref<1x32xf32, #tpu.memory_space<vmem>>, %arg4: memref<32x32xbf16, #tpu.memory_space<vmem>>, %arg5: memref<32x32xbf16, #tpu.memory_space<vmem>>, %arg6: memref<32x32xbf16, #tpu.memory_space<vmem>>, %arg7: memref<32x32xbf16, #tpu.memory_space<vmem>>, %arg8: memref<1x32xf32, #tpu.memory_space<vmem>>, %arg9: memref<1x32xf32, #tpu.memory_space<vmem>>, %arg10: memref<1x32xf32, #tpu.memory_space<vmem>>, %arg11: memref<32x128xbf16, #tpu.memory_space<vmem>>, %arg12: memref<1x128xf32, #tpu.memory_space<vmem>>, %arg13: memref<128x32xbf16, #tpu.memory_space<vmem>>, %arg14: memref<1x32xf32, #tpu.memory_space<vmem>>, %arg15: memref<1x8x32xf32, #tpu.memory_space<vmem>>) attributes {dimension_semantics = [#tpu.dimension_semantics<parallel>], iteration_bounds = array<i64: 2>, scalar_prefetch = 0 : i64, scratch_operands = 0 : i64, tpu.core_type = #tpu.core_type<tc>, window_params = [{transform_indices = @transform_0, window_bounds = array<i64: 1, 8, 32>}, {pipeline_mode = #tpu.pipeline_mode<synchronous>, transform_indices = @transform_1, window_bounds = array<i64: 1, 32>}, {pipeline_mode = #tpu.pipeline_mode<synchronous>, transform_indices = @transform_2, window_bounds = array<i64: 1, 32>}, {pipeline_mode = #tpu.pipeline_mode<synchronous>, transform_indices = @transform_3, window_bounds = array<i64: 32, 32>}, {pipeline_mode = #tpu.pipeline_mode<synchronous>, transform_indices = @transform_4, window_bounds = array<i64: 32, 32>}, {pipeline_mode = #tpu.pipeline_mode<synchronous>, transform_indices = @transform_5, window_bounds = array<i64: 32, 32>}, {pipeline_mode = #tpu.pipeline_mode<synchronous>, transform_indices = @transform_6, window_bounds = array<i64: 32, 32>}, {pipeline_mode = #tpu.pipeline_mode<synchronous>, transform_indices = @transform_7, window_bounds = array<i64: 1, 32>}, {pipeline_mode = #tpu.pipeline_mode<synchronous>, transform_indices = @transform_8, window_bounds = array<i64: 1, 32>}, {pipeline_mode = #tpu.pipeline_mode<synchronous>, transform_indices = @transform_9, window_bounds = array<i64: 1, 32>}, {pipeline_mode = #tpu.pipeline_mode<synchronous>, transform_indices = @transform_10, window_bounds = array<i64: 32, 128>}, {pipeline_mode = #tpu.pipeline_mode<synchronous>, transform_indices = @transform_11, window_bounds = array<i64: 1, 128>}, {pipeline_mode = #tpu.pipeline_mode<synchronous>, transform_indices = @transform_12, window_bounds = array<i64: 128, 32>}, {pipeline_mode = #tpu.pipeline_mode<synchronous>, transform_indices = @transform_13, window_bounds = array<i64: 1, 32>}, {transform_indices = @transform_14, window_bounds = array<i64: 1, 8, 32>}]} {
    %c0 = arith.constant 0 : index
    %c0_0 = arith.constant 0 : index
    %c0_1 = arith.constant 0 : index
    %0 = vector.load %arg1[%c0, %c0_0, %c0_1] : memref<1x8x32xf32, #tpu.memory_space<vmem>>, vector<1x8x32xf32>
    %1 = vector.shape_cast %0 : vector<1x8x32xf32> to vector<8x32xf32>
    %c0_2 = arith.constant 0 : index
    %c0_3 = arith.constant 0 : index
    %2 = vector.load %arg2[%c0_2, %c0_3] : memref<1x32xf32, #tpu.memory_space<vmem>>, vector<1x32xf32>
    %3 = vector.shape_cast %2 : vector<1x32xf32> to vector<32xf32>
    %c0_4 = arith.constant 0 : index
    %c0_5 = arith.constant 0 : index
    %4 = vector.load %arg3[%c0_4, %c0_5] : memref<1x32xf32, #tpu.memory_space<vmem>>, vector<1x32xf32>
    %5 = vector.shape_cast %4 : vector<1x32xf32> to vector<32xf32>
    %cst = arith.constant dense<0.000000e+00> : vector<8xf32>
    %6 = vector.multi_reduction <add>, %1, %cst [1] : vector<8x32xf32> to vector<8xf32>
    %7 = vector.shape_cast %6 : vector<8xf32> to vector<8x1xf32>
    %cst_6 = arith.constant 3.200000e+01 : f32
    %8 = vector.broadcast %cst_6 : f32 to vector<8x1xf32>
    %9 = arith.divf %7, %8 : vector<8x1xf32>
    %10 = vector.broadcast %9 : vector<8x1xf32> to vector<8x32xf32>
    %11 = arith.subf %1, %10 : vector<8x32xf32>
    %12 = arith.mulf %11, %11 : vector<8x32xf32>
    %cst_7 = arith.constant dense<0.000000e+00> : vector<8xf32>
    %13 = vector.multi_reduction <add>, %12, %cst_7 [1] : vector<8x32xf32> to vector<8xf32>
    %14 = vector.shape_cast %13 : vector<8xf32> to vector<8x1xf32>
    %cst_8 = arith.constant 3.200000e+01 : f32
    %15 = vector.broadcast %cst_8 : f32 to vector<8x1xf32>
    %16 = arith.divf %14, %15 : vector<8x1xf32>
    %17 = vector.broadcast %9 : vector<8x1xf32> to vector<8x32xf32>
    %18 = arith.subf %1, %17 : vector<8x32xf32>
    %cst_9 = arith.constant 9.99999974E-6 : f32
    %19 = vector.broadcast %cst_9 : f32 to vector<8x1xf32>
    %20 = arith.addf %16, %19 : vector<8x1xf32>
    %21 = math.rsqrt %20 : vector<8x1xf32>
    %22 = vector.broadcast %21 : vector<8x1xf32> to vector<8x32xf32>
    %23 = arith.mulf %18, %22 : vector<8x32xf32>
    %24 = vector.shape_cast %3 : vector<32xf32> to vector<1x32xf32>
    %25 = vector.broadcast %24 : vector<1x32xf32> to vector<8x32xf32>
    %26 = arith.mulf %23, %25 : vector<8x32xf32>
    %27 = vector.shape_cast %5 : vector<32xf32> to vector<1x32xf32>
    %28 = vector.broadcast %27 : vector<1x32xf32> to vector<8x32xf32>
    %29 = arith.addf %26, %28 : vector<8x32xf32>
    %30 = arith.truncf %29 : vector<8x32xf32> to vector<8x32xbf16>
    %c0_10 = arith.constant 0 : index
    %c0_11 = arith.constant 0 : index
    %31 = vector.load %arg4[%c0_10, %c0_11] : memref<32x32xbf16, #tpu.memory_space<vmem>>, vector<32x32xbf16>
    %cst_12 = arith.constant dense<0.000000e+00> : vector<8x32xf32>
    %32 = tpu.matmul %30, %31, %cst_12 {dimension_numbers = #tpu.dot_dimension_numbers<[1], [0], [0], [1], [0, 0, 1, 1], [], []>} : vector<8x32xbf16>, vector<32x32xbf16>, vector<8x32xf32> -> vector<8x32xf32>
    %c0_13 = arith.constant 0 : index
    %c0_14 = arith.constant 0 : index
    %33 = vector.load %arg5[%c0_13, %c0_14] : memref<32x32xbf16, #tpu.memory_space<vmem>>, vector<32x32xbf16>
    %cst_15 = arith.constant dense<0.000000e+00> : vector<8x32xf32>
    %34 = tpu.matmul %30, %33, %cst_15 {dimension_numbers = #tpu.dot_dimension_numbers<[1], [0], [0], [1], [0, 0, 1, 1], [], []>} : vector<8x32xbf16>, vector<32x32xbf16>, vector<8x32xf32> -> vector<8x32xf32>
    %c0_16 = arith.constant 0 : index
    %c0_17 = arith.constant 0 : index
    %35 = vector.load %arg6[%c0_16, %c0_17] : memref<32x32xbf16, #tpu.memory_space<vmem>>, vector<32x32xbf16>
    %cst_18 = arith.constant dense<0.000000e+00> : vector<8x32xf32>
    %36 = tpu.matmul %30, %35, %cst_18 {dimension_numbers = #tpu.dot_dimension_numbers<[1], [0], [0], [1], [0, 0, 1, 1], [], []>} : vector<8x32xbf16>, vector<32x32xbf16>, vector<8x32xf32> -> vector<8x32xf32>
    %37 = vector.shape_cast %32 : vector<8x32xf32> to vector<8x4x8xf32>
    %38 = tpu.transpose %37, [1, 0, 2] : vector<8x4x8xf32> -> vector<4x8x8xf32>
    %39 = arith.truncf %38 : vector<4x8x8xf32> to vector<4x8x8xbf16>
    %40 = vector.shape_cast %34 : vector<8x32xf32> to vector<8x4x8xf32>
    %41 = tpu.transpose %40, [1, 0, 2] : vector<8x4x8xf32> -> vector<4x8x8xf32>
    %42 = arith.truncf %41 : vector<4x8x8xf32> to vector<4x8x8xbf16>
    %43 = vector.shape_cast %36 : vector<8x32xf32> to vector<8x4x8xf32>
    %44 = tpu.transpose %43, [1, 0, 2] : vector<8x4x8xf32> -> vector<4x8x8xf32>
    %45 = arith.truncf %44 : vector<4x8x8xf32> to vector<4x8x8xbf16>
    "tpu.trace_start"() <{level = 10 : i32, message = "hnd,hmd->hnm"}> : () -> ()
    %cst_19 = arith.constant dense<0.000000e+00> : vector<4x8x8xf32>
    %46 = tpu.matmul %39, %42, %cst_19 {dimension_numbers = #tpu.dot_dimension_numbers<[2], [2], [1], [1], [0, 0, 0, 1, 1, 1], [0], [0]>} : vector<4x8x8xbf16>, vector<4x8x8xbf16>, vector<4x8x8xf32> -> vector<4x8x8xf32>
    "tpu.trace_stop"() : () -> ()
    %cst_20 = arith.constant dense<0xFF800000> : vector<4x8xf32>
    %47 = vector.multi_reduction <maximumf>, %46, %cst_20 [2] : vector<4x8x8xf32> to vector<4x8xf32>
    %48 = vector.shape_cast %47 : vector<4x8xf32> to vector<4x8x1xf32>
    %49 = vector.broadcast %48 : vector<4x8x1xf32> to vector<4x8x8xf32>
    %50 = arith.subf %46, %49 : vector<4x8x8xf32>
    %51 = math.exp %50 : vector<4x8x8xf32>
    %cst_21 = arith.constant dense<0.000000e+00> : vector<4x8xf32>
    %52 = vector.multi_reduction <add>, %51, %cst_21 [2] : vector<4x8x8xf32> to vector<4x8xf32>
    %53 = vector.shape_cast %52 : vector<4x8xf32> to vector<4x8x1xf32>
    %54 = tpu.reciprocal %53 {approx = true} : vector<4x8x1xf32> -> vector<4x8x1xf32>
    %55 = vector.broadcast %54 : vector<4x8x1xf32> to vector<4x8x8xf32>
    %56 = arith.mulf %51, %55 : vector<4x8x8xf32>
    %57 = arith.truncf %56 : vector<4x8x8xf32> to vector<4x8x8xbf16>
    "tpu.trace_start"() <{level = 10 : i32, message = "hnm,hmd->hnd"}> : () -> ()
    %cst_22 = arith.constant dense<0.000000e+00> : vector<4x8x8xf32>
    %58 = tpu.matmul %57, %45, %cst_22 {dimension_numbers = #tpu.dot_dimension_numbers<[2], [1], [1], [2], [0, 0, 0, 1, 1, 2], [0], [0]>} : vector<4x8x8xbf16>, vector<4x8x8xbf16>, vector<4x8x8xf32> -> vector<4x8x8xf32>
    "tpu.trace_stop"() : () -> ()
    %59 = tpu.transpose %58, [1, 0, 2] : vector<4x8x8xf32> -> vector<8x4x8xf32>
    %60 = vector.shape_cast %59 : vector<8x4x8xf32> to vector<8x32xf32>
    %61 = arith.truncf %60 : vector<8x32xf32> to vector<8x32xbf16>
    %c0_23 = arith.constant 0 : index
    %c0_24 = arith.constant 0 : index
    %62 = vector.load %arg7[%c0_23, %c0_24] : memref<32x32xbf16, #tpu.memory_space<vmem>>, vector<32x32xbf16>
    %cst_25 = arith.constant dense<0.000000e+00> : vector<8x32xf32>
    %63 = tpu.matmul %61, %62, %cst_25 {dimension_numbers = #tpu.dot_dimension_numbers<[1], [0], [0], [1], [0, 0, 1, 1], [], []>} : vector<8x32xbf16>, vector<32x32xbf16>, vector<8x32xf32> -> vector<8x32xf32>
    %c0_26 = arith.constant 0 : index
    %c0_27 = arith.constant 0 : index
    %64 = vector.load %arg8[%c0_26, %c0_27] : memref<1x32xf32, #tpu.memory_space<vmem>>, vector<1x32xf32>
    %65 = vector.shape_cast %64 : vector<1x32xf32> to vector<32xf32>
    %66 = vector.shape_cast %65 : vector<32xf32> to vector<1x32xf32>
    %67 = vector.broadcast %66 : vector<1x32xf32> to vector<8x32xf32>
    %68 = arith.addf %63, %67 : vector<8x32xf32>
    %69 = arith.addf %1, %68 : vector<8x32xf32>
    %c0_28 = arith.constant 0 : index
    %c0_29 = arith.constant 0 : index
    %70 = vector.load %arg9[%c0_28, %c0_29] : memref<1x32xf32, #tpu.memory_space<vmem>>, vector<1x32xf32>
    %71 = vector.shape_cast %70 : vector<1x32xf32> to vector<32xf32>
    %c0_30 = arith.constant 0 : index
    %c0_31 = arith.constant 0 : index
    %72 = vector.load %arg10[%c0_30, %c0_31] : memref<1x32xf32, #tpu.memory_space<vmem>>, vector<1x32xf32>
    %73 = vector.shape_cast %72 : vector<1x32xf32> to vector<32xf32>
    %cst_32 = arith.constant dense<0.000000e+00> : vector<8xf32>
    %74 = vector.multi_reduction <add>, %69, %cst_32 [1] : vector<8x32xf32> to vector<8xf32>
    %75 = vector.shape_cast %74 : vector<8xf32> to vector<8x1xf32>
    %cst_33 = arith.constant 3.200000e+01 : f32
    %76 = vector.broadcast %cst_33 : f32 to vector<8x1xf32>
    %77 = arith.divf %75, %76 : vector<8x1xf32>
    %78 = vector.broadcast %77 : vector<8x1xf32> to vector<8x32xf32>
    %79 = arith.subf %69, %78 : vector<8x32xf32>
    %80 = arith.mulf %79, %79 : vector<8x32xf32>
    %cst_34 = arith.constant dense<0.000000e+00> : vector<8xf32>
    %81 = vector.multi_reduction <add>, %80, %cst_34 [1] : vector<8x32xf32> to vector<8xf32>
    %82 = vector.shape_cast %81 : vector<8xf32> to vector<8x1xf32>
    %cst_35 = arith.constant 3.200000e+01 : f32
    %83 = vector.broadcast %cst_35 : f32 to vector<8x1xf32>
    %84 = arith.divf %82, %83 : vector<8x1xf32>
    %85 = vector.broadcast %77 : vector<8x1xf32> to vector<8x32xf32>
    %86 = arith.subf %69, %85 : vector<8x32xf32>
    %cst_36 = arith.constant 9.99999974E-6 : f32
    %87 = vector.broadcast %cst_36 : f32 to vector<8x1xf32>
    %88 = arith.addf %84, %87 : vector<8x1xf32>
    %89 = math.rsqrt %88 : vector<8x1xf32>
    %90 = vector.broadcast %89 : vector<8x1xf32> to vector<8x32xf32>
    %91 = arith.mulf %86, %90 : vector<8x32xf32>
    %92 = vector.shape_cast %71 : vector<32xf32> to vector<1x32xf32>
    %93 = vector.broadcast %92 : vector<1x32xf32> to vector<8x32xf32>
    %94 = arith.mulf %91, %93 : vector<8x32xf32>
    %95 = vector.shape_cast %73 : vector<32xf32> to vector<1x32xf32>
    %96 = vector.broadcast %95 : vector<1x32xf32> to vector<8x32xf32>
    %97 = arith.addf %94, %96 : vector<8x32xf32>
    %98 = arith.truncf %97 : vector<8x32xf32> to vector<8x32xbf16>
    %c0_37 = arith.constant 0 : index
    %c0_38 = arith.constant 0 : index
    %99 = vector.load %arg11[%c0_37, %c0_38] : memref<32x128xbf16, #tpu.memory_space<vmem>>, vector<32x128xbf16>
    %cst_39 = arith.constant dense<0.000000e+00> : vector<8x128xf32>
    %100 = tpu.matmul %98, %99, %cst_39 {dimension_numbers = #tpu.dot_dimension_numbers<[1], [0], [0], [1], [0, 0, 1, 1], [], []>} : vector<8x32xbf16>, vector<32x128xbf16>, vector<8x128xf32> -> vector<8x128xf32>
    %c0_40 = arith.constant 0 : index
    %c0_41 = arith.constant 0 : index
    %101 = vector.load %arg12[%c0_40, %c0_41] : memref<1x128xf32, #tpu.memory_space<vmem>>, vector<1x128xf32>
    %102 = vector.shape_cast %101 : vector<1x128xf32> to vector<128xf32>
    %103 = vector.shape_cast %102 : vector<128xf32> to vector<1x128xf32>
    %104 = vector.broadcast %103 : vector<1x128xf32> to vector<8x128xf32>
    %105 = arith.addf %100, %104 : vector<8x128xf32>
    %cst_42 = arith.constant 5.000000e-01 : f32
    %106 = vector.broadcast %cst_42 : f32 to vector<8x128xf32>
    %107 = arith.mulf %106, %105 : vector<8x128xf32>
    %cst_43 = arith.constant 0.707106769 : f32
    %108 = vector.broadcast %cst_43 : f32 to vector<8x128xf32>
    %109 = arith.mulf %105, %108 : vector<8x128xf32>
    %110 = math.absf %109 : vector<8x128xf32>
    %cst_44 = arith.constant 0.327591091 : f32
    %111 = vector.broadcast %cst_44 : f32 to vector<8x128xf32>
    %112 = arith.mulf %111, %110 : vector<8x128xf32>
    %cst_45 = arith.constant 1.000000e+00 : f32
    %113 = vector.broadcast %cst_45 : f32 to vector<8x128xf32>
    %114 = arith.addf %113, %112 : vector<8x128xf32>
    %cst_46 = arith.constant 1.000000e+00 : f32
    %115 = vector.broadcast %cst_46 : f32 to vector<8x128xf32>
    %116 = arith.divf %115, %114 : vector<8x128xf32>
    %cst_47 = arith.constant 1.06140542 : f32
    %117 = vector.broadcast %cst_47 : f32 to vector<8x128xf32>
    %118 = arith.mulf %117, %116 : vector<8x128xf32>
    %cst_48 = arith.constant -1.45315206 : f32
    %119 = vector.broadcast %cst_48 : f32 to vector<8x128xf32>
    %120 = arith.addf %118, %119 : vector<8x128xf32>
    %121 = arith.mulf %120, %116 : vector<8x128xf32>
    %cst_49 = arith.constant 1.42141378 : f32
    %122 = vector.broadcast %cst_49 : f32 to vector<8x128xf32>
    %123 = arith.addf %121, %122 : vector<8x128xf32>
    %124 = arith.mulf %123, %116 : vector<8x128xf32>
    %cst_50 = arith.constant -0.284496725 : f32
    %125 = vector.broadcast %cst_50 : f32 to vector<8x128xf32>
    %126 = arith.addf %124, %125 : vector<8x128xf32>
    %127 = arith.mulf %126, %116 : vector<8x128xf32>
    %cst_51 = arith.constant 0.254829586 : f32
    %128 = vector.broadcast %cst_51 : f32 to vector<8x128xf32>
    %129 = arith.addf %127, %128 : vector<8x128xf32>
    %130 = arith.mulf %129, %116 : vector<8x128xf32>
    %cst_52 = arith.constant 0.000000e+00 : f32
    %131 = vector.broadcast %cst_52 : f32 to vector<8x128xf32>
    %132 = arith.subf %131, %110 : vector<8x128xf32>
    %133 = arith.mulf %132, %110 : vector<8x128xf32>
    %134 = math.exp %133 : vector<8x128xf32>
    %135 = arith.mulf %130, %134 : vector<8x128xf32>
    %cst_53 = arith.constant 1.000000e+00 : f32
    %136 = vector.broadcast %cst_53 : f32 to vector<8x128xf32>
    %137 = arith.subf %136, %135 : vector<8x128xf32>
    %cst_54 = arith.constant 0.000000e+00 : f32
    %138 = vector.broadcast %cst_54 : f32 to vector<8x128xf32>
    %139 = arith.cmpf oge, %109, %138 : vector<8x128xf32>
    %cst_55 = arith.constant 0.000000e+00 : f32
    %140 = vector.broadcast %cst_55 : f32 to vector<8x128xf32>
    %141 = arith.subf %140, %137 : vector<8x128xf32>
    %142 = arith.select %139, %137, %141 : vector<8x128xi1>, vector<8x128xf32>
    %cst_56 = arith.constant 1.000000e+00 : f32
    %143 = vector.broadcast %cst_56 : f32 to vector<8x128xf32>
    %144 = arith.addf %143, %142 : vector<8x128xf32>
    %145 = arith.mulf %107, %144 : vector<8x128xf32>
    %146 = arith.truncf %145 : vector<8x128xf32> to vector<8x128xbf16>
    %c0_57 = arith.constant 0 : index
    %c0_58 = arith.constant 0 : index
    %147 = vector.load %arg13[%c0_57, %c0_58] : memref<128x32xbf16, #tpu.memory_space<vmem>>, vector<128x32xbf16>
    %cst_59 = arith.constant dense<0.000000e+00> : vector<8x32xf32>
    %148 = tpu.matmul %146, %147, %cst_59 {dimension_numbers = #tpu.dot_dimension_numbers<[1], [0], [0], [1], [0, 0, 1, 1], [], []>} : vector<8x128xbf16>, vector<128x32xbf16>, vector<8x32xf32> -> vector<8x32xf32>
    %c0_60 = arith.constant 0 : index
    %c0_61 = arith.constant 0 : index
    %149 = vector.load %arg14[%c0_60, %c0_61] : memref<1x32xf32, #tpu.memory_space<vmem>>, vector<1x32xf32>
    %150 = vector.shape_cast %149 : vector<1x32xf32> to vector<32xf32>
    %151 = vector.shape_cast %150 : vector<32xf32> to vector<1x32xf32>
    %152 = vector.broadcast %151 : vector<1x32xf32> to vector<8x32xf32>
    %153 = arith.addf %148, %152 : vector<8x32xf32>
    %154 = arith.addf %69, %153 : vector<8x32xf32>
    %c0_62 = arith.constant 0 : index
    %c0_63 = arith.constant 0 : index
    %c0_64 = arith.constant 0 : index
    %155 = vector.load %arg15[%c0_62, %c0_63, %c0_64] : memref<1x8x32xf32, #tpu.memory_space<vmem>>, vector<1x8x32xf32>
    %156 = vector.shape_cast %155 : vector<1x8x32xf32> to vector<8x32xf32>
    %157 = vector.shape_cast %154 : vector<8x32xf32> to vector<1x8x32xf32>
    tpu.vector_store %arg15[%c0_62, %c0_63, %c0_64], %157 {strides = array<i32>} : memref<1x8x32xf32, #tpu.memory_space<vmem>>, vector<1x8x32xf32>,
    return
  }
  func.func @transform_0(%arg0: i32) -> (i32, i32, i32) {
    %c0_i32 = arith.constant 0 : i32
    %c0_i32_0 = arith.constant 0 : i32
    %c0_i32_1 = arith.constant 0 : i32
    return %arg0, %c0_i32, %c0_i32_0 : i32, i32, i32
  }
  func.func @transform_1(%arg0: i32) -> (i32, i32) {
    %c0_i32 = arith.constant 0 : i32
    %c0_i32_0 = arith.constant 0 : i32
    %c0_i32_1 = arith.constant 0 : i32
    return %c0_i32, %c0_i32_0 : i32, i32
  }
  func.func @transform_2(%arg0: i32) -> (i32, i32) {
    %c0_i32 = arith.constant 0 : i32
    %c0_i32_0 = arith.constant 0 : i32
    %c0_i32_1 = arith.constant 0 : i32
    return %c0_i32, %c0_i32_0 : i32, i32
  }
  func.func @transform_3(%arg0: i32) -> (i32, i32) {
    %c0_i32 = arith.constant 0 : i32
    %c0_i32_0 = arith.constant 0 : i32
    %c0_i32_1 = arith.constant 0 : i32
    return %c0_i32, %c0_i32_0 : i32, i32
  }
  func.func @transform_4(%arg0: i32) -> (i32, i32) {
    %c0_i32 = arith.constant 0 : i32
    %c0_i32_0 = arith.constant 0 : i32
    %c0_i32_1 = arith.constant 0 : i32
    return %c0_i32, %c0_i32_0 : i32, i32
  }
  func.func @transform_5(%arg0: i32) -> (i32, i32) {
    %c0_i32 = arith.constant 0 : i32
    %c0_i32_0 = arith.constant 0 : i32
    %c0_i32_1 = arith.constant 0 : i32
    return %c0_i32, %c0_i32_0 : i32, i32
  }
  func.func @transform_6(%arg0: i32) -> (i32, i32) {
    %c0_i32 = arith.constant 0 : i32
    %c0_i32_0 = arith.constant 0 : i32
    %c0_i32_1 = arith.constant 0 : i32
    return %c0_i32, %c0_i32_0 : i32, i32
  }
  func.func @transform_7(%arg0: i32) -> (i32, i32) {
    %c0_i32 = arith.constant 0 : i32
    %c0_i32_0 = arith.constant 0 : i32
    %c0_i32_1 = arith.constant 0 : i32
    return %c0_i32, %c0_i32_0 : i32, i32
  }
  func.func @transform_8(%arg0: i32) -> (i32, i32) {
    %c0_i32 = arith.constant 0 : i32
    %c0_i32_0 = arith.constant 0 : i32
    %c0_i32_1 = arith.constant 0 : i32
    return %c0_i32, %c0_i32_0 : i32, i32
  }
  func.func @transform_9(%arg0: i32) -> (i32, i32) {
    %c0_i32 = arith.constant 0 : i32
    %c0_i32_0 = arith.constant 0 : i32
    %c0_i32_1 = arith.constant 0 : i32
    return %c0_i32, %c0_i32_0 : i32, i32
  }
  func.func @transform_10(%arg0: i32) -> (i32, i32) {
    %c0_i32 = arith.constant 0 : i32
    %c0_i32_0 = arith.constant 0 : i32
    %c0_i32_1 = arith.constant 0 : i32
    return %c0_i32, %c0_i32_0 : i32, i32
  }
  func.func @transform_11(%arg0: i32) -> (i32, i32) {
    %c0_i32 = arith.constant 0 : i32
    %c0_i32_0 = arith.constant 0 : i32
    %c0_i32_1 = arith.constant 0 : i32
    return %c0_i32, %c0_i32_0 : i32, i32
  }
  func.func @transform_12(%arg0: i32) -> (i32, i32) {
    %c0_i32 = arith.constant 0 : i32
    %c0_i32_0 = arith.constant 0 : i32
    %c0_i32_1 = arith.constant 0 : i32
    return %c0_i32, %c0_i32_0 : i32, i32
  }
  func.func @transform_13(%arg0: i32) -> (i32, i32) {
    %c0_i32 = arith.constant 0 : i32
    %c0_i32_0 = arith.constant 0 : i32
    %c0_i32_1 = arith.constant 0 : i32
    return %c0_i32, %c0_i32_0 : i32, i32
  }
  func.func @transform_14(%arg0: i32) -> (i32, i32, i32) {
    %c0_i32 = arith.constant 0 : i32
    %c0_i32_0 = arith.constant 0 : i32
    %c0_i32_1 = arith.constant 0 : i32
    return %arg0, %c0_i32, %c0_i32_0 : i32, i32, i32
  }
}

</mosaic_0001>

<llo_original>
// kernel: tpu_custom_call.1
$region0: #{tpu_custom_call.1}
  #allocation0 [shape = 'u32[]', space=smem, size = 0x4, offset = 0x4, fixed_abs, tag = 'smem constant byte address 0x4 - core index']
  #allocation1 [shape = 'u32[144,128]{1,0:T(1,128)}', space=vmem, size = 0x12000, scoped, tag = 'internal scratch']
  %s0 = inlined_call_operand.vmem [shape: f32[2,8,32], index: 0, kind: input, shape index: {}]
  %s1 = inlined_call_operand.vmem [shape: f32[1,32], index: 1, kind: input, shape index: {}]
  %s2 = inlined_call_operand.vmem [shape: f32[1,32], index: 2, kind: input, shape index: {}]
  %s3 = inlined_call_operand.vmem [shape: bf16[32,32], index: 3, kind: input, shape index: {}]
  %s4 = inlined_call_operand.vmem [shape: bf16[32,32], index: 4, kind: input, shape index: {}]
  %s5 = inlined_call_operand.vmem [shape: bf16[32,32], index: 5, kind: input, shape index: {}]
  %s6 = inlined_call_operand.vmem [shape: bf16[32,32], index: 6, kind: input, shape index: {}]
  %s7 = inlined_call_operand.vmem [shape: f32[1,32], index: 7, kind: input, shape index: {}]
  %s8 = inlined_call_operand.vmem [shape: f32[1,32], index: 8, kind: input, shape index: {}]
  %s9 = inlined_call_operand.vmem [shape: f32[1,32], index: 9, kind: input, shape index: {}]
  %s10 = inlined_call_operand.hbm [shape: bf16[32,128], index: 10, kind: input, shape index: {}]
  %s11 = inlined_call_operand.hbm [shape: f32[1,128], index: 11, kind: input, shape index: {}]
  %s12 = inlined_call_operand.vmem [shape: bf16[128,32], index: 12, kind: input, shape index: {}]
  %s13 = inlined_call_operand.vmem [shape: f32[1,32], index: 13, kind: input, shape index: {}]
  %s14 = inlined_call_operand.hbm [shape: f32[2,8,32], index: 14, kind: output, shape index: {}]
  %s15 = sld [smem:[#allocation0]]
  $region97: #{tpu_custom_call.1} parent=0
    _
  %s17 = ssub.s32 1, %s15
  %s18 = scalar_select 0, %s17, %s15
  $region1: #{tpu_custom_call.1} parent=0
    #allocation2 [shape = 'u8[8192]{0}', space=vmem, size = 0x2000, scoped, tag = 'input window, operand 10, single buffered']
    #allocation3 [shape = 's32[2]{0}', space=sflag, size = 0x8, scoped, tag = 'scoped memory for tpu_custom_call.1']
    #allocation4 [shape = 's32[2]{0}', space=sflag, size = 0x8, scoped, tag = 'scoped memory for tpu_custom_call.1']
    #allocation5 [shape = 'u8[512]{0}', space=vmem, size = 0x400, scoped, tag = 'input window, operand 11, single buffered']
    #allocation6 [shape = 's32[1]{0}', space=sflag, size = 0x4, scoped, tag = 'scoped memory for tpu_custom_call.1']
    #allocation7 [shape = 'u8[8192]{0}', space=vmem, size = 0x2000, scoped, tag = 'output window, operand 0']
    %19 = vsyncpa [#allocation3], 0
    %20 = vsyncpa [#allocation6], 0
    %21 = vsyncpa [#allocation4], 0
    %s22 = scalar_lea.sflag [#allocation4], 1
    %23 = vsyncpa %s22, 0
    loop: start=0, step=1, limit=4
    $region2: #{tpu_custom_call.1} parent=1 // loop_pre_header
      _
    $region3: #{tpu_custom_call.1} parent=1 // loop_header
      %s25 = sphi 0, %s29
      %p26 = scmp.ge.s32.totalorder %s25, 4
      %s35 = sphi 0, %s37
      %s38 = sphi 0, %s35
      %s39 = sphi 0, %s38
      %s55 = sphi 0, %s39
      %s59 = sphi 0, %s59
      %s61 = sphi 0, %s59
      %s62 = sphi 0, %s61
      %s76 = sphi 0, %s62
      %s80 = sphi 0, %s80
      %s82 = sphi 0, %s80
      %s83 = sphi 0, %s82
      %s97 = sphi 0, %s83
      %s101 = sphi 0, %s101
      %s103 = sphi 0, %s101
      %s104 = sphi 0, %s103
      %s118 = sphi 0, %s104
      %s122 = sphi 0, %s122
      %s124 = sphi 0, %s122
      %s125 = sphi 0, %s124
      %s139 = sphi 0, %s125
      %s143 = sphi 0, %s143
      %s145 = sphi 0, %s143
      %s146 = sphi 0, %s145
      %s160 = sphi 0, %s146
      %s164 = sphi 0, %s164
      %s166 = sphi 0, %s164
      %s167 = sphi 0, %s166
      %s181 = sphi 0, %s167
      %s185 = sphi 0, %s185
      %s187 = sphi 0, %s185
      %s188 = sphi 0, %s187
      %s202 = sphi 0, %s188
      %s206 = sphi 0, %s206
      %s208 = sphi 0, %s206
      %s209 = sphi 0, %s208
      %s223 = sphi 0, %s209
      %s227 = sphi 0, %s227
      %s229 = sphi 0, %s227
      %s230 = sphi 0, %s229
      %s244 = sphi 0, %s230
      %s248 = sphi 0, %s248
      %s250 = sphi 0, %s248
      %s251 = sphi 0, %s250
      %s265 = sphi 0, %s251
      %s269 = sphi 0, %s269
      %s271 = sphi 0, %s269
      %s272 = sphi 0, %s271
      %s286 = sphi 0, %s272
      %s290 = sphi 0, %s290
      %s292 = sphi 0, %s290
      %s293 = sphi 0, %s292
      %s307 = sphi 0, %s293
      %s311 = sphi 0, %s311
      %s313 = sphi 0, %s311
      %s314 = sphi 0, %s313
      %s328 = sphi 0, %s314
      %s334 = sphi 0, %s336
      %s337 = sphi 0, %s334
      %s338 = sphi 0, %s337
      %s354 = sphi 0, %s338
    $region4: #{tpu_custom_call.1} parent=1 // loop_header_branch
      %28 = sbr.rel (%p26) target = $region8
    $region5: #{tpu_custom_call.1} parent=1 // loop_body
      %s30 = ssub.s32 %s25, 1
      %s31 = ssub.s32 %s25, 2
      %s32 = sadd.s32 %s25, 1
      %s33 = ssub.s32 %s25, %s32
      %p34 = scmp.eq.s32.totalorder %s33, 0
      %s36 = sadd.s32 %s35, 1
      %s37 = scalar_select %p34, %s35, %s36
      %p40 = pneg %p34
      %p41 = scmp.eq.s32.totalorder %s25, 1
      %p42 = por %p40, %p41
      %p43 = scmp.ne.s32.totalorder %s35, %s38
      %p44 = scmp.eq.s32.totalorder %s25, 0
      %p45 = por %p43, %p44
      %p46 = scmp.ne.s32.totalorder %s35, %s38
      %p47 = scmp.eq.s32.totalorder %s30, 1
      %p48 = por %p46, %p47
      %p49 = scmp.ne.s32.totalorder %s38, %s39
      %p50 = scmp.eq.s32.totalorder %s30, 0
      %p51 = por %p49, %p50
      %p52 = scmp.ne.s32.totalorder %s38, %s39
      %p53 = scmp.eq.s32.totalorder %s31, 1
      %p54 = por %p52, %p53
      %p56 = scmp.ne.s32.totalorder %s39, %s55
      %p57 = scmp.eq.s32.totalorder %s31, 0
      %p58 = por %p56, %p57
      %s60 = sadd.s32 %s59, 1
      %p63 = scmp.eq.s32.totalorder %s25, 1
      %p64 = scmp.ne.s32.totalorder %s59, %s61
      %p65 = scmp.eq.s32.totalorder %s25, 0
      %p66 = por %p64, %p65
      %p67 = scmp.ne.s32.totalorder %s59, %s61
      %p68 = scmp.eq.s32.totalorder %s30, 1
      %p69 = por %p67, %p68
      %p70 = scmp.ne.s32.totalorder %s61, %s62
      %p71 = scmp.eq.s32.totalorder %s30, 0
      %p72 = por %p70, %p71
      %p73 = scmp.ne.s32.totalorder %s61, %s62
      %p74 = scmp.eq.s32.totalorder %s31, 1
      %p75 = por %p73, %p74
      %p77 = scmp.ne.s32.totalorder %s62, %s76
      %p78 = scmp.eq.s32.totalorder %s31, 0
      %p79 = por %p77, %p78
      %s81 = sadd.s32 %s80, 1
      %p84 = scmp.eq.s32.totalorder %s25, 1
      %p85 = scmp.ne.s32.totalorder %s80, %s82
      %p86 = scmp.eq.s32.totalorder %s25, 0
      %p87 = por %p85, %p86
      %p88 = scmp.ne.s32.totalorder %s80, %s82
      %p89 = scmp.eq.s32.totalorder %s30, 1
      %p90 = por %p88, %p89
      %p91 = scmp.ne.s32.totalorder %s82, %s83
      %p92 = scmp.eq.s32.totalorder %s30, 0
      %p93 = por %p91, %p92
      %p94 = scmp.ne.s32.totalorder %s82, %s83
      %p95 = scmp.eq.s32.totalorder %s31, 1
      %p96 = por %p94, %p95
      %p98 = scmp.ne.s32.totalorder %s83, %s97
      %p99 = scmp.eq.s32.totalorder %s31, 0
      %p100 = por %p98, %p99
      %s102 = sadd.s32 %s101, 1
      %p105 = scmp.eq.s32.totalorder %s25, 1
      %p106 = scmp.ne.s32.totalorder %s101, %s103
      %p107 = scmp.eq.s32.totalorder %s25, 0
      %p108 = por %p106, %p107
      %p109 = scmp.ne.s32.totalorder %s101, %s103
      %p110 = scmp.eq.s32.totalorder %s30, 1
      %p111 = por %p109, %p110
      %p112 = scmp.ne.s32.totalorder %s103, %s104
      %p113 = scmp.eq.s32.totalorder %s30, 0
      %p114 = por %p112, %p113
      %p115 = scmp.ne.s32.totalorder %s103, %s104
      %p116 = scmp.eq.s32.totalorder %s31, 1
      %p117 = por %p115, %p116
      %p119 = scmp.ne.s32.totalorder %s104, %s118
      %p120 = scmp.eq.s32.totalorder %s31, 0
      %p121 = por %p119, %p120
      %s123 = sadd.s32 %s122, 1
      %p126 = scmp.eq.s32.totalorder %s25, 1
      %p127 = scmp.ne.s32.totalorder %s122, %s124
      %p128 = scmp.eq.s32.totalorder %s25, 0
      %p129 = por %p127, %p128
      %p130 = scmp.ne.s32.totalorder %s122, %s124
      %p131 = scmp.eq.s32.totalorder %s30, 1
      %p132 = por %p130, %p131
      %p133 = scmp.ne.s32.totalorder %s124, %s125
      %p134 = scmp.eq.s32.totalorder %s30, 0
      %p135 = por %p133, %p134
      %p136 = scmp.ne.s32.totalorder %s124, %s125
      %p137 = scmp.eq.s32.totalorder %s31, 1
      %p138 = por %p136, %p137
      %p140 = scmp.ne.s32.totalorder %s125, %s139
      %p141 = scmp.eq.s32.totalorder %s31, 0
      %p142 = por %p140, %p141
      %s144 = sadd.s32 %s143, 1
      %p147 = scmp.eq.s32.totalorder %s25, 1
      %p148 = scmp.ne.s32.totalorder %s143, %s145
      %p149 = scmp.eq.s32.totalorder %s25, 0
      %p150 = por %p148, %p149
      %p151 = scmp.ne.s32.totalorder %s143, %s145
      %p152 = scmp.eq.s32.totalorder %s30, 1
      %p153 = por %p151, %p152
      %p154 = scmp.ne.s32.totalorder %s145, %s146
      %p155 = scmp.eq.s32.totalorder %s30, 0
      %p156 = por %p154, %p155
      %p157 = scmp.ne.s32.totalorder %s145, %s146
      %p158 = scmp.eq.s32.totalorder %s31, 1
      %p159 = por %p157, %p158
      %p161 = scmp.ne.s32.totalorder %s146, %s160
      %p162 = scmp.eq.s32.totalorder %s31, 0
      %p163 = por %p161, %p162
      %s165 = sadd.s32 %s164, 1
      %p168 = scmp.eq.s32.totalorder %s25, 1
      %p169 = scmp.ne.s32.totalorder %s164, %s166
      %p170 = scmp.eq.s32.totalorder %s25, 0
      %p171 = por %p169, %p170
      %p172 = scmp.ne.s32.totalorder %s164, %s166
      %p173 = scmp.eq.s32.totalorder %s30, 1
      %p174 = por %p172, %p173
      %p175 = scmp.ne.s32.totalorder %s166, %s167
      %p176 = scmp.eq.s32.totalorder %s30, 0
      %p177 = por %p175, %p176
      %p178 = scmp.ne.s32.totalorder %s166, %s167
      %p179 = scmp.eq.s32.totalorder %s31, 1
      %p180 = por %p178, %p179
      %p182 = scmp.ne.s32.totalorder %s167, %s181
      %p183 = scmp.eq.s32.totalorder %s31, 0
      %p184 = por %p182, %p183
      %s186 = sadd.s32 %s185, 1
      %p189 = scmp.eq.s32.totalorder %s25, 1
      %p190 = scmp.ne.s32.totalorder %s185, %s187
      %p191 = scmp.eq.s32.totalorder %s25, 0
      %p192 = por %p190, %p191
      %p193 = scmp.ne.s32.totalorder %s185, %s187
      %p194 = scmp.eq.s32.totalorder %s30, 1
      %p195 = por %p193, %p194
      %p196 = scmp.ne.s32.totalorder %s187, %s188
      %p197 = scmp.eq.s32.totalorder %s30, 0
      %p198 = por %p196, %p197
      %p199 = scmp.ne.s32.totalorder %s187, %s188
      %p200 = scmp.eq.s32.totalorder %s31, 1
      %p201 = por %p199, %p200
      %p203 = scmp.ne.s32.totalorder %s188, %s202
      %p204 = scmp.eq.s32.totalorder %s31, 0
      %p205 = por %p203, %p204
      %s207 = sadd.s32 %s206, 1
      %p210 = scmp.eq.s32.totalorder %s25, 1
      %p211 = scmp.ne.s32.totalorder %s206, %s208
      %p212 = scmp.eq.s32.totalorder %s25, 0
      %p213 = por %p211, %p212
      %p214 = scmp.ne.s32.totalorder %s206, %s208
      %p215 = scmp.eq.s32.totalorder %s30, 1
      %p216 = por %p214, %p215
      %p217 = scmp.ne.s32.totalorder %s208, %s209
      %p218 = scmp.eq.s32.totalorder %s30, 0
      %p219 = por %p217, %p218
      %p220 = scmp.ne.s32.totalorder %s208, %s209
      %p221 = scmp.eq.s32.totalorder %s31, 1
      %p222 = por %p220, %p221
      %p224 = scmp.ne.s32.totalorder %s209, %s223
      %p225 = scmp.eq.s32.totalorder %s31, 0
      %p226 = por %p224, %p225
      %s228 = sadd.s32 %s227, 1
      %p231 = scmp.eq.s32.totalorder %s25, 1
      %p232 = scmp.ne.s32.totalorder %s227, %s229
      %p233 = scmp.eq.s32.totalorder %s25, 0
      %p234 = por %p232, %p233
      %p235 = scmp.ne.s32.totalorder %s227, %s229
      %p236 = scmp.eq.s32.totalorder %s30, 1
      %p237 = por %p235, %p236
      %p238 = scmp.ne.s32.totalorder %s229, %s230
      %p239 = scmp.eq.s32.totalorder %s30, 0
      %p240 = por %p238, %p239
      %p241 = scmp.ne.s32.totalorder %s229, %s230
      %p242 = scmp.eq.s32.totalorder %s31, 1
      %p243 = por %p241, %p242
      %p245 = scmp.ne.s32.totalorder %s230, %s244
      %p246 = scmp.eq.s32.totalorder %s31, 0
      %p247 = por %p245, %p246
      %s249 = sadd.s32 %s248, 1
      %p252 = scmp.eq.s32.totalorder %s25, 1
      %p253 = scmp.ne.s32.totalorder %s248, %s250
      %p254 = scmp.eq.s32.totalorder %s25, 0
      %p255 = por %p253, %p254
      %p256 = scmp.ne.s32.totalorder %s248, %s250
      %p257 = scmp.eq.s32.totalorder %s30, 1
      %p258 = por %p256, %p257
      %p259 = scmp.ne.s32.totalorder %s250, %s251
      %p260 = scmp.eq.s32.totalorder %s30, 0
      %p261 = por %p259, %p260
      %p262 = scmp.ne.s32.totalorder %s250, %s251
      %p263 = scmp.eq.s32.totalorder %s31, 1
      %p264 = por %p262, %p263
      %p266 = scmp.ne.s32.totalorder %s251, %s265
      %p267 = scmp.eq.s32.totalorder %s31, 0
      %p268 = por %p266, %p267
      %s270 = sadd.s32 %s269, 1
      %p273 = scmp.eq.s32.totalorder %s25, 1
      %p274 = scmp.ne.s32.totalorder %s269, %s271
      %p275 = scmp.eq.s32.totalorder %s25, 0
      %p276 = por %p274, %p275
      %p277 = scmp.ne.s32.totalorder %s269, %s271
      %p278 = scmp.eq.s32.totalorder %s30, 1
      %p279 = por %p277, %p278
      %p280 = scmp.ne.s32.totalorder %s271, %s272
      %p281 = scmp.eq.s32.totalorder %s30, 0
      %p282 = por %p280, %p281
      %p283 = scmp.ne.s32.totalorder %s271, %s272
      %p284 = scmp.eq.s32.totalorder %s31, 1
      %p285 = por %p283, %p284
      %p287 = scmp.ne.s32.totalorder %s272, %s286
      %p288 = scmp.eq.s32.totalorder %s31, 0
      %p289 = por %p287, %p288
      %s291 = sadd.s32 %s290, 1
      %p294 = scmp.eq.s32.totalorder %s25, 1
      %p295 = scmp.ne.s32.totalorder %s290, %s292
      %p296 = scmp.eq.s32.totalorder %s25, 0
      %p297 = por %p295, %p296
      %p298 = scmp.ne.s32.totalorder %s290, %s292
      %p299 = scmp.eq.s32.totalorder %s30, 1
      %p300 = por %p298, %p299
      %p301 = scmp.ne.s32.totalorder %s292, %s293
      %p302 = scmp.eq.s32.totalorder %s30, 0
      %p303 = por %p301, %p302
      %p304 = scmp.ne.s32.totalorder %s292, %s293
      %p305 = scmp.eq.s32.totalorder %s31, 1
      %p306 = por %p304, %p305
      %p308 = scmp.ne.s32.totalorder %s293, %s307
      %p309 = scmp.eq.s32.totalorder %s31, 0
      %p310 = por %p308, %p309
      %s312 = sadd.s32 %s311, 1
      %p315 = scmp.eq.s32.totalorder %s25, 1
      %p316 = scmp.ne.s32.totalorder %s311, %s313
      %p317 = scmp.eq.s32.totalorder %s25, 0
      %p318 = por %p316, %p317
      %p319 = scmp.ne.s32.totalorder %s311, %s313
      %p320 = scmp.eq.s32.totalorder %s30, 1
      %p321 = por %p319, %p320
      %p322 = scmp.ne.s32.totalorder %s313, %s314
      %p323 = scmp.eq.s32.totalorder %s30, 0
      %p324 = por %p322, %p323
      %p325 = scmp.ne.s32.totalorder %s313, %s314
      %p326 = scmp.eq.s32.totalorder %s31, 1
      %p327 = por %p325, %p326
      %p329 = scmp.ne.s32.totalorder %s314, %s328
      %p330 = scmp.eq.s32.totalorder %s31, 0
      %p331 = por %p329, %p330
      %s332 = ssub.s32 %s25, %s32
      %p333 = scmp.eq.s32.totalorder %s332, 0
      %s335 = sadd.s32 %s334, 1
      %s336 = scalar_select %p333, %s334, %s335
      %p339 = pneg %p333
      %p340 = scmp.eq.s32.totalorder %s25, 1
      %p341 = por %p339, %p340
      %p342 = scmp.ne.s32.totalorder %s334, %s337
      %p343 = scmp.eq.s32.totalorder %s25, 0
      %p344 = por %p342, %p343
      %p345 = scmp.ne.s32.totalorder %s334, %s337
      %p346 = scmp.eq.s32.totalorder %s30, 1
      %p347 = por %p345, %p346
      %p348 = scmp.ne.s32.totalorder %s337, %s338
      %p349 = scmp.eq.s32.totalorder %s30, 0
      %p350 = por %p348, %p349
      %p351 = scmp.ne.s32.totalorder %s337, %s338
      %p352 = scmp.eq.s32.totalorder %s31, 1
      %p353 = por %p351, %p352
      %p355 = scmp.ne.s32.totalorder %s338, %s354
      %p356 = scmp.eq.s32.totalorder %s31, 0
      %p357 = por %p355, %p356
      %p358 = scmp.le.s32.totalorder 1, %s25
      %p359 = scmp.lt.s32.totalorder %s25, 3
      %p360 = pnand %p358, %p359
      %p361 = pneg %p360
      // Predicated region
      $region9: #{tpu_custom_call.1} parent=5 // pred_check
        _
      $region10: #{tpu_custom_call.1} parent=5 // pred_check_branch
        %363 = sbr.rel (%p360) target = $region12
      $region11: #{tpu_custom_call.1} parent=5 // pred_region
        %s364 = ssub.s32 %s25, 1
        // Predicated region
        $region13: #{tpu_custom_call.1} parent=11 // pred_check
          %p365 = pneg %p72
        $region14: #{tpu_custom_call.1} parent=11 // pred_check_branch
          %367 = sbr.rel (%p365) target = $region16
        $region15: #{tpu_custom_call.1} parent=11 // pred_region
          _
        $region16: #{tpu_custom_call.1} parent=11 // pred_fallthru
          _
        // Predicated region
        $region17: #{tpu_custom_call.1} parent=11 // pred_check
          %p368 = pneg %p93
        $region18: #{tpu_custom_call.1} parent=11 // pred_check_branch
          %370 = sbr.rel (%p368) target = $region20
        $region19: #{tpu_custom_call.1} parent=11 // pred_region
          _
        $region20: #{tpu_custom_call.1} parent=11 // pred_fallthru
          _
        // Predicated region
        $region21: #{tpu_custom_call.1} parent=11 // pred_check
          %p371 = pneg %p114
        $region22: #{tpu_custom_call.1} parent=11 // pred_check_branch
          %373 = sbr.rel (%p371) target = $region24
        $region23: #{tpu_custom_call.1} parent=11 // pred_region
          _
        $region24: #{tpu_custom_call.1} parent=11 // pred_fallthru
          _
        // Predicated region
        $region25: #{tpu_custom_call.1} parent=11 // pred_check
          %p374 = pneg %p135
        $region26: #{tpu_custom_call.1} parent=11 // pred_check_branch
          %376 = sbr.rel (%p374) target = $region28
        $region27: #{tpu_custom_call.1} parent=11 // pred_region
          _
        $region28: #{tpu_custom_call.1} parent=11 // pred_fallthru
          _
        // Predicated region
        $region29: #{tpu_custom_call.1} parent=11 // pred_check
          %p377 = pneg %p156
        $region30: #{tpu_custom_call.1} parent=11 // pred_check_branch
          %379 = sbr.rel (%p377) target = $region32
        $region31: #{tpu_custom_call.1} parent=11 // pred_region
          _
        $region32: #{tpu_custom_call.1} parent=11 // pred_fallthru
          _
        // Predicated region
        $region33: #{tpu_custom_call.1} parent=11 // pred_check
          %p380 = pneg %p177
        $region34: #{tpu_custom_call.1} parent=11 // pred_check_branch
          %382 = sbr.rel (%p380) target = $region36
        $region35: #{tpu_custom_call.1} parent=11 // pred_region
          _
        $region36: #{tpu_custom_call.1} parent=11 // pred_fallthru
          _
        // Predicated region
        $region37: #{tpu_custom_call.1} parent=11 // pred_check
          %p383 = pneg %p198
        $region38: #{tpu_custom_call.1} parent=11 // pred_check_branch
          %385 = sbr.rel (%p383) target = $region40
        $region39: #{tpu_custom_call.1} parent=11 // pred_region
          _
        $region40: #{tpu_custom_call.1} parent=11 // pred_fallthru
          _
        // Predicated region
        $region41: #{tpu_custom_call.1} parent=11 // pred_check
          %p386 = pneg %p219
        $region42: #{tpu_custom_call.1} parent=11 // pred_check_branch
          %388 = sbr.rel (%p386) target = $region44
        $region43: #{tpu_custom_call.1} parent=11 // pred_region
          _
        $region44: #{tpu_custom_call.1} parent=11 // pred_fallthru
          _
        // Predicated region
        $region45: #{tpu_custom_call.1} parent=11 // pred_check
          %p389 = pneg %p240
        $region46: #{tpu_custom_call.1} parent=11 // pred_check_branch
          %391 = sbr.rel (%p389) target = $region48
        $region47: #{tpu_custom_call.1} parent=11 // pred_region
          _
        $region48: #{tpu_custom_call.1} parent=11 // pred_fallthru
          _
        // Predicated region
        $region49: #{tpu_custom_call.1} parent=11 // pred_check
          %p392 = pneg %p261
        $region50: #{tpu_custom_call.1} parent=11 // pred_check_branch
          %394 = sbr.rel (%p392) target = $region52
        $region51: #{tpu_custom_call.1} parent=11 // pred_region
          %s396 = ssub.s32 256, 256
          %397 = vsyncadd [#allocation3], %s396
          %s398 = sshll.u32 [#allocation2], 4
          %s399 = int_to_ptr.vmem [resolvable:$true] %s398
          %404 = dma.hbm_to_vmem [thread:$0]  %s10, 256, %s399, [#allocation3], 64, 64, 4
        $region52: #{tpu_custom_call.1} parent=11 // pred_fallthru
          _
        // Predicated region
        $region53: #{tpu_custom_call.1} parent=11 // pred_check
          %p405 = pneg %p282
        $region54: #{tpu_custom_call.1} parent=11 // pred_check_branch
          %407 = sbr.rel (%p405) target = $region56
        $region55: #{tpu_custom_call.1} parent=11 // pred_region
          %s409 = ssub.s32 16, 16
          %410 = vsyncadd [#allocation6], %s409
          %s412 = sshll.u32 [#allocation5], 4
          %s413 = int_to_ptr.vmem [resolvable:$true] %s412
          %415 = dma.hbm_to_vmem [thread:$0]  %s11, 16, %s413, [#allocation6]
        $region56: #{tpu_custom_call.1} parent=11 // pred_fallthru
          _
        // Predicated region
        $region57: #{tpu_custom_call.1} parent=11 // pred_check
          %p416 = pneg %p303
        $region58: #{tpu_custom_call.1} parent=11 // pred_check_branch
          %418 = sbr.rel (%p416) target = $region60
        $region59: #{tpu_custom_call.1} parent=11 // pred_region
          _
        $region60: #{tpu_custom_call.1} parent=11 // pred_fallthru
          _
        // Predicated region
        $region61: #{tpu_custom_call.1} parent=11 // pred_check
          %p419 = pneg %p324
        $region62: #{tpu_custom_call.1} parent=11 // pred_check_branch
          %421 = sbr.rel (%p419) target = $region64
        $region63: #{tpu_custom_call.1} parent=11 // pred_region
          _
        $region64: #{tpu_custom_call.1} parent=11 // pred_fallthru
          _
      $region12: #{tpu_custom_call.1} parent=5 // pred_fallthru
        _
      %p422 = scmp.lt.s32.totalorder %s25, 2
      // Predicated region
      $region65: #{tpu_custom_call.1} parent=5 // pred_check
        %p423 = pneg %p422
      $region66: #{tpu_custom_call.1} parent=5 // pred_check_branch
        %425 = sbr.rel (%p423) target = $region68
      $region67: #{tpu_custom_call.1} parent=5 // pred_region
        // Predicated region
        $region69: #{tpu_custom_call.1} parent=67 // pred_check
          %p426 = pneg %p45
        $region70: #{tpu_custom_call.1} parent=67 // pred_check_branch
          %428 = sbr.rel (%p426) target = $region72
        $region71: #{tpu_custom_call.1} parent=67 // pred_region
          %p429 = scmp.lt.s32.totalorder %s25, 1
          %s430 = scalar_select %p429, %s25, 1
          %s431 = smul.addr %s430, 8
          %s432 = scalar_lea.vmem %s0, %s431
        $region72: #{tpu_custom_call.1} parent=67 // pred_fallthru
          _
      $region68: #{tpu_custom_call.1} parent=5 // pred_fallthru
        _
      %p433 = scmp.le.s32.totalorder 1, %s25
      %p434 = scmp.lt.s32.totalorder %s25, 3
      %p435 = pnand %p433, %p434
      %p436 = pneg %p435
      // Predicated region
      $region73: #{tpu_custom_call.1} parent=5 // pred_check
        _
      $region74: #{tpu_custom_call.1} parent=5 // pred_check_branch
        %438 = sbr.rel (%p435) target = $region76
      $region75: #{tpu_custom_call.1} parent=5 // pred_region
        %s439 = ssub.s32 %s25, 1
        // Predicated region
        $region77: #{tpu_custom_call.1} parent=75 // pred_check
          %p440 = pneg %p261
        $region78: #{tpu_custom_call.1} parent=75 // pred_check_branch
          %442 = sbr.rel (%p440) target = $region80
        $region79: #{tpu_custom_call.1} parent=75 // pred_region
          %443 = dma.done [#allocation3], 256
        $region80: #{tpu_custom_call.1} parent=75 // pred_fallthru
          _
        // Predicated region
        $region81: #{tpu_custom_call.1} parent=75 // pred_check
          %p444 = pneg %p282
        $region82: #{tpu_custom_call.1} parent=75 // pred_check_branch
          %446 = sbr.rel (%p444) target = $region84
        $region83: #{tpu_custom_call.1} parent=75 // pred_region
          %447 = dma.done [#allocation6], 16
        $region84: #{tpu_custom_call.1} parent=75 // pred_fallthru
          _
        %p448 = scmp.lt.s32.totalorder %s30, 1
        %s449 = scalar_select %p448, %s30, 1
        %s450 = smul.addr %s449, 8
        %s451 = scalar_lea.vmem %s0, %s450
        %p452 = pneg %p51
        %p453 = pneg %p48
        %p454 = pneg %p72
        %p455 = pneg %p69
        %p456 = pneg %p93
        %p457 = pneg %p90
        %p458 = pneg %p114
        %p459 = pneg %p111
        %p460 = pneg %p135
        %p461 = pneg %p132
        %p462 = pneg %p156
        %p463 = pneg %p153
        %p464 = pneg %p177
        %p465 = pneg %p174
        %p466 = pneg %p198
        %p467 = pneg %p195
        %p468 = pneg %p219
        %p469 = pneg %p216
        %p470 = pneg %p240
        %p471 = pneg %p237
        %p472 = pneg %p261
        %p473 = pneg %p258
        %p474 = pneg %p282
        %p475 = pneg %p279
        %p476 = pneg %p303
        %p477 = pneg %p300
        %p478 = pneg %p324
        %p479 = pneg %p321
        %p480 = pneg %p350
        %p481 = pneg %p347
        %s482 = sand.u32 %s337, 1
        %s483 = scalar_lea.sflag [#allocation4], %s482
        %s484 = sand.u32 %s337, 1
        %s485 = smul.addr %s484, 8
        %s486 = scalar_lea.vmem [#allocation7], %s485
        %p487 = scmp.lt.s32.totalorder %s30, 1
        %s488 = scalar_select %p487, %s30, 1
        %s489 = smul.addr %s488, 8
        %s490 = scalar_lea.vmem %s0, %s489
        %v492 = vld [vmem:[%s490] sm:$0xff]
        %v493 = vld [vmem:[%s1] sm:$0x1]
        %v494 = vld [vmem:[%s2] sm:$0x1]
        %vm495 = vcmask 261120
        %v496 = vsel %vm495, %v492, 0.0
        %497 = vadd.xlane.f32.xlu0 %v496
        %v498 = vpop.xlane.xlu0 %497
        %v499 = vrcp.pop 32.0
        %v500 = vmul.f32 %v498, %v499
        %v501 = vsub.f32 %v492, %v500
        %v502 = vmul.f32 %v501, %v501
        %v503 = vsel %vm495, %v502, 0.0
        %504 = vadd.xlane.f32.xlu0 %v503
        %v505 = vpop.xlane.xlu0 %504
        %v506 = vmul.f32 %v505, %v499
        %v507 = vadd.f32 %v506, 1e-05
        %v508 = vrsqrt.pop %v507
        %v509 = vmul.f32 %v501, %v508
        %v511 = vlaneseq
        %v512 = vshrl.u32 %v511, 7
        %v513 = vsub.s32 0, %v512
        %v514 = vrot.slane %v493, %v513
        %v516 = vmul.f32 %v509, %v514
        %v518 = vlaneseq
        %v519 = vshrl.u32 %v518, 7
        %v520 = vsub.s32 0, %v519
        %v521 = vrot.slane %v494, %v520
        %v523 = vadd.f32 %v516, %v521
        %v524 = vpack.c.bf16 %v523, %v523
        %v525 = vld [vmem:[%s3] sm:$0xf]
        %v526 = vld [vmem:[%s3 + $0x4] sm:$0xf]
        %v527 = vld [vmem:[%s3 + $0x8] sm:$0xf]
        %v528 = vld [vmem:[%s3 + $0xc] sm:$0xf]
        %v533 = vunpack.c.l.b16 %v525
        %v534 = vunpack.c.l.b16 %v526
        %v535 = vunpack.c.l.b16 %v527
        %v536 = vunpack.c.l.b16 %v528
        %v537 = vpack.c.b16 %v534, %v533
        %v538 = vpack.c.b16 %v536, %v535
        %v542 = vsel %vm495, %v524, 0
        %544 = vmatprep.subr.bf16.mxu0 0
        %545 = vmatpush1.bf16.msra.mxu0 0
        %546 = vmatprep.subr.bf16.mxu0 0
        %547 = vmatpush1.bf16.msra.mxu0 0
        %548 = vmatprep.subr.bf16.mxu0 0
        %549 = vmatpush1.bf16.msra.mxu0 0
        %550 = vmatprep.subr.bf16.mxu0 0
        %551 = vmatpush1.bf16.msra.mxu0 0
        %552 = vmatprep.subr.bf16.mxu0 0
        %553 = vmatpush1.bf16.msra.mxu0 0
        %554 = vmatprep.subr.bf16.mxu0 0
        %555 = vmatpush1.bf16.msra.mxu0 0
        %556 = vmatprep.subr.bf16.mxu0 0
        %557 = vmatpush1.bf16.msra.mxu0 %v538
        %558 = vmatprep.subr.bf16.mxu0 0
        %559 = vmatpush1.bf16.msra.mxu0 %v537
        %560 = vmatprep.subr.bf16.mxu0 0
        %561 = vmatpush2.bf16.msra.mxu0 0
        %562 = vmatprep.subr.bf16.mxu0 0
        %563 = vmatpush2.bf16.msra.mxu0 0
        %564 = vmatprep.subr.bf16.mxu0 0
        %565 = vmatpush2.bf16.msra.mxu0 0
        %566 = vmatprep.subr.bf16.mxu0 0
        %567 = vmatpush2.bf16.msra.mxu0 0
        %568 = vmatprep.subr.bf16.mxu0 0
        %569 = vmatpush2.bf16.msra.mxu0 0
        %570 = vmatprep.subr.bf16.mxu0 0
        %571 = vmatpush2.bf16.msra.mxu0 0
        %572 = vmatprep.subr.bf16.mxu0 0
        %573 = vmatpush2.bf16.msra.mxu0 0
        %574 = vmatprep.subr.bf16.mxu0 0
        %575 = vmatpush2.bf16.msra.mxu0 0
        %576 = vmatprep.mubr.bf16.mxu0 0
        %577 = vmatmul.mubr.bf16.gmra.mxu0 %v542
        %v578 = vpop.f32.mrf.mxu0
        %v579 = vadd.f32 0.0, %v578
        %v580 = vpop.f32.mrf.mxu0
        %v581 = vpop.f32.mrf.mxu0
        %v582 = vpop.f32.mrf.mxu0
        %583 = vdwg.mxu0
        %v584 = vld [vmem:[%s4] sm:$0xf]
        %v585 = vld [vmem:[%s4 + $0x4] sm:$0xf]
        %v586 = vld [vmem:[%s4 + $0x8] sm:$0xf]
        %v587 = vld [vmem:[%s4 + $0xc] sm:$0xf]
        %v592 = vunpack.c.l.b16 %v584
        %v593 = vunpack.c.l.b16 %v585
        %v594 = vunpack.c.l.b16 %v586
        %v595 = vunpack.c.l.b16 %v587
        %v596 = vpack.c.b16 %v593, %v592
        %v597 = vpack.c.b16 %v595, %v594
        %600 = vmatprep.subr.bf16.mxu0 0
        %601 = vmatpush1.bf16.msra.mxu0 0
        %602 = vmatprep.subr.bf16.mxu0 0
        %603 = vmatpush1.bf16.msra.mxu0 0
        %604 = vmatprep.subr.bf16.mxu0 0
        %605 = vmatpush1.bf16.msra.mxu0 0
        %606 = vmatprep.subr.bf16.mxu0 0
        %607 = vmatpush1.bf16.msra.mxu0 0
        %608 = vmatprep.subr.bf16.mxu0 0
        %609 = vmatpush1.bf16.msra.mxu0 0
        %610 = vmatprep.subr.bf16.mxu0 0
        %611 = vmatpush1.bf16.msra.mxu0 0
        %612 = vmatprep.subr.bf16.mxu0 0
        %613 = vmatpush1.bf16.msra.mxu0 %v597
        %614 = vmatprep.subr.bf16.mxu0 0
        %615 = vmatpush1.bf16.msra.mxu0 %v596
        %616 = vmatprep.subr.bf16.mxu0 0
        %617 = vmatpush2.bf16.msra.mxu0 0
        %618 = vmatprep.subr.bf16.mxu0 0
        %619 = vmatpush2.bf16.msra.mxu0 0
        %620 = vmatprep.subr.bf16.mxu0 0
        %621 = vmatpush2.bf16.msra.mxu0 0
        %622 = vmatprep.subr.bf16.mxu0 0
        %623 = vmatpush2.bf16.msra.mxu0 0
        %624 = vmatprep.subr.bf16.mxu0 0
        %625 = vmatpush2.bf16.msra.mxu0 0
        %626 = vmatprep.subr.bf16.mxu0 0
        %627 = vmatpush2.bf16.msra.mxu0 0
        %628 = vmatprep.subr.bf16.mxu0 0
        %629 = vmatpush2.bf16.msra.mxu0 0
        %630 = vmatprep.subr.bf16.mxu0 0
        %631 = vmatpush2.bf16.msra.mxu0 0
        %632 = vmatprep.mubr.bf16.mxu0 0
        %633 = vmatmul.mubr.bf16.gmra.mxu0 %v542
        %v634 = vpop.f32.mrf.mxu0
        %v635 = vadd.f32 0.0, %v634
        %v636 = vpop.f32.mrf.mxu0
        %v637 = vpop.f32.mrf.mxu0
        %v638 = vpop.f32.mrf.mxu0
        %639 = vdwg.mxu0
        %v640 = vld [vmem:[%s5] sm:$0xf]
        %v641 = vld [vmem:[%s5 + $0x4] sm:$0xf]
        %v642 = vld [vmem:[%s5 + $0x8] sm:$0xf]
        %v643 = vld [vmem:[%s5 + $0xc] sm:$0xf]
        %v648 = vunpack.c.l.b16 %v640
        %v649 = vunpack.c.l.b16 %v641
        %v650 = vunpack.c.l.b16 %v642
        %v651 = vunpack.c.l.b16 %v643
        %v652 = vpack.c.b16 %v649, %v648
        %v653 = vpack.c.b16 %v651, %v650
        %656 = vmatprep.subr.bf16.mxu0 0
        %657 = vmatpush1.bf16.msra.mxu0 0
        %658 = vmatprep.subr.bf16.mxu0 0
        %659 = vmatpush1.bf16.msra.mxu0 0
        %660 = vmatprep.subr.bf16.mxu0 0
        %661 = vmatpush1.bf16.msra.mxu0 0
        %662 = vmatprep.subr.bf16.mxu0 0
        %663 = vmatpush1.bf16.msra.mxu0 0
        %664 = vmatprep.subr.bf16.mxu0 0
        %665 = vmatpush1.bf16.msra.mxu0 0
        %666 = vmatprep.subr.bf16.mxu0 0
        %667 = vmatpush1.bf16.msra.mxu0 0
        %668 = vmatprep.subr.bf16.mxu0 0
        %669 = vmatpush1.bf16.msra.mxu0 %v653
        %670 = vmatprep.subr.bf16.mxu0 0
        %671 = vmatpush1.bf16.msra.mxu0 %v652
        %672 = vmatprep.subr.bf16.mxu0 0
        %673 = vmatpush2.bf16.msra.mxu0 0
        %674 = vmatprep.subr.bf16.mxu0 0
        %675 = vmatpush2.bf16.msra.mxu0 0
        %676 = vmatprep.subr.bf16.mxu0 0
        %677 = vmatpush2.bf16.msra.mxu0 0
        %678 = vmatprep.subr.bf16.mxu0 0
        %679 = vmatpush2.bf16.msra.mxu0 0
        %680 = vmatprep.subr.bf16.mxu0 0
        %681 = vmatpush2.bf16.msra.mxu0 0
        %682 = vmatprep.subr.bf16.mxu0 0
        %683 = vmatpush2.bf16.msra.mxu0 0
        %684 = vmatprep.subr.bf16.mxu0 0
        %685 = vmatpush2.bf16.msra.mxu0 0
        %686 = vmatprep.subr.bf16.mxu0 0
        %687 = vmatpush2.bf16.msra.mxu0 0
        %688 = vmatprep.mubr.bf16.mxu0 0
        %689 = vmatmul.mubr.bf16.gmra.mxu0 %v542
        %v690 = vpop.f32.mrf.mxu0
        %v691 = vadd.f32 0.0, %v690
        %v692 = vpop.f32.mrf.mxu0
        %v693 = vpop.f32.mrf.mxu0
        %v694 = vpop.f32.mrf.mxu0
        %695 = vdwg.mxu0
        %697 = vrot.lane.b32.xlu0 %v579, 120
        %v698 = vpop.permute.xlu0 %697
        %700 = vrot.lane.b32.xlu0 %v579, 112
        %v701 = vpop.permute.xlu0 %700
        %703 = vrot.lane.b32.xlu0 %v579, 104
        %v704 = vpop.permute.xlu0 %703
        %v706 = vcombine.low %v579, %v701
        %v707 = vcombine.high %v579, %v701
        %v709 = vunpack.c.l.s4 1983009808
        %v710 = vunpack.c.0.s8 %v709
        %v711 = vlaneseq
        %v712 = vshrl.u32 %v711, 7
        %v713 = vsub.s32 %v710, %v712
        %v714 = vrot.slane %v706, %v713
        %v716 = vunpack.c.l.s4 1983009808
        %v717 = vunpack.c.0.s8 %v716
        %v718 = vlaneseq
        %v719 = vshrl.u32 %v718, 7
        %v720 = vsub.s32 %v717, %v719
        %v721 = vrot.slane %v707, %v720
        %v722 = vcombine.low %v698, %v704
        %v723 = vcombine.high %v698, %v704
        %v725 = vunpack.c.l.s4 1983009808
        %v726 = vunpack.c.0.s8 %v725
        %v727 = vlaneseq
        %v728 = vshrl.u32 %v727, 7
        %v729 = vsub.s32 %v726, %v728
        %v730 = vrot.slane %v722, %v729
        %v732 = vunpack.c.l.s4 1983009808
        %v733 = vunpack.c.0.s8 %v732
        %v734 = vlaneseq
        %v735 = vshrl.u32 %v734, 7
        %v736 = vsub.s32 %v733, %v735
        %v737 = vrot.slane %v723, %v736
        %v738 = vcombine.low %v714, %v730
        %v739 = vcombine.high %v714, %v730
        %v741 = vunpack.c.l.s4 1934713408
        %v742 = vunpack.c.0.s8 %v741
        %v743 = vlaneseq
        %v744 = vshrl.u32 %v743, 7
        %v745 = vsub.s32 %v742, %v744
        %v746 = vrot.slane %v738, %v745
        %v748 = vunpack.c.l.s4 1934713408
        %v749 = vunpack.c.0.s8 %v748
        %v750 = vlaneseq
        %v751 = vshrl.u32 %v750, 7
        %v752 = vsub.s32 %v749, %v751
        %v753 = vrot.slane %v739, %v752
        %v754 = vcombine.low %v721, %v737
        %v755 = vcombine.high %v721, %v737
        %v757 = vunpack.c.l.s4 1934713408
        %v758 = vunpack.c.0.s8 %v757
        %v759 = vlaneseq
        %v760 = vshrl.u32 %v759, 7
        %v761 = vsub.s32 %v758, %v760
        %v762 = vrot.slane %v754, %v761
        %v764 = vunpack.c.l.s4 1934713408
        %v765 = vunpack.c.0.s8 %v764
        %v766 = vlaneseq
        %v767 = vshrl.u32 %v766, 7
        %v768 = vsub.s32 %v765, %v767
        %v769 = vrot.slane %v755, %v768
        %v770 = vcombine.high %v746, 0.0
        %v771 = vcombine.high %v753, 0.0
        %v772 = vcombine.high %v762, 0.0
        %v773 = vcombine.high %v769, 0.0
        %v774 = vcombine.low %v746, %v753
        %v776 = vunpack.c.l.s4 1983009808
        %v777 = vunpack.c.0.s8 %v776
        %v778 = vlaneseq
        %v779 = vshrl.u32 %v778, 7
        %v780 = vsub.s32 %v777, %v779
        %v781 = vrot.slane %v774, %v780
        %v782 = vcombine.low %v770, %v771
        %v784 = vunpack.c.l.s4 1983009808
        %v785 = vunpack.c.0.s8 %v784
        %v786 = vlaneseq
        %v787 = vshrl.u32 %v786, 7
        %v788 = vsub.s32 %v785, %v787
        %v789 = vrot.slane %v782, %v788
        %v790 = vcombine.low %v762, %v769
        %v792 = vunpack.c.l.s4 1983009808
        %v793 = vunpack.c.0.s8 %v792
        %v794 = vlaneseq
        %v795 = vshrl.u32 %v794, 7
        %v796 = vsub.s32 %v793, %v795
        %v797 = vrot.slane %v790, %v796
        %v798 = vcombine.low %v772, %v773
        %v800 = vunpack.c.l.s4 1983009808
        %v801 = vunpack.c.0.s8 %v800
        %v802 = vlaneseq
        %v803 = vshrl.u32 %v802, 7
        %v804 = vsub.s32 %v801, %v803
        %v805 = vrot.slane %v798, %v804
        %v806 = vcombine.low %v781, %v789
        %v807 = vcombine.high %v781, %v789
        %v809 = vunpack.c.l.s4 1934713408
        %v810 = vunpack.c.0.s8 %v809
        %v811 = vlaneseq
        %v812 = vshrl.u32 %v811, 7
        %v813 = vsub.s32 %v810, %v812
        %v814 = vrot.slane %v806, %v813
        %v816 = vunpack.c.l.s4 1934713408
        %v817 = vunpack.c.0.s8 %v816
        %v818 = vlaneseq
        %v819 = vshrl.u32 %v818, 7
        %v820 = vsub.s32 %v817, %v819
        %v821 = vrot.slane %v807, %v820
        %v822 = vcombine.low %v797, %v805
        %v823 = vcombine.high %v797, %v805
        %v825 = vunpack.c.l.s4 1934713408
        %v826 = vunpack.c.0.s8 %v825
        %v827 = vlaneseq
        %v828 = vshrl.u32 %v827, 7
        %v829 = vsub.s32 %v826, %v828
        %v830 = vrot.slane %v822, %v829
        %v832 = vunpack.c.l.s4 1934713408
        %v833 = vunpack.c.0.s8 %v832
        %v834 = vlaneseq
        %v835 = vshrl.u32 %v834, 7
        %v836 = vsub.s32 %v833, %v835
        %v837 = vrot.slane %v823, %v836
        %v838 = vcombine.low %v814, %v830
        %v839 = vcombine.high %v814, %v830
        %v840 = vcombine.low %v821, %v837
        %v841 = vcombine.high %v821, %v837
        %v842 = vpack.c.bf16 %v838, %v838
        %v843 = vpack.c.bf16 %v839, %v839
        %v844 = vpack.c.bf16 %v840, %v840
        %v845 = vpack.c.bf16 %v841, %v841
        %847 = vrot.lane.b32.xlu0 %v635, 120
        %v848 = vpop.permute.xlu0 %847
        %850 = vrot.lane.b32.xlu0 %v635, 112
        %v851 = vpop.permute.xlu0 %850
        %853 = vrot.lane.b32.xlu0 %v635, 104
        %v854 = vpop.permute.xlu0 %853
        %v856 = vcombine.low %v635, %v851
        %v857 = vcombine.high %v635, %v851
        %v859 = vunpack.c.l.s4 1983009808
        %v860 = vunpack.c.0.s8 %v859
        %v861 = vlaneseq
        %v862 = vshrl.u32 %v861, 7
        %v863 = vsub.s32 %v860, %v862
        %v864 = vrot.slane %v856, %v863
        %v866 = vunpack.c.l.s4 1983009808
        %v867 = vunpack.c.0.s8 %v866
        %v868 = vlaneseq
        %v869 = vshrl.u32 %v868, 7
        %v870 = vsub.s32 %v867, %v869
        %v871 = vrot.slane %v857, %v870
        %v872 = vcombine.low %v848, %v854
        %v873 = vcombine.high %v848, %v854
        %v875 = vunpack.c.l.s4 1983009808
        %v876 = vunpack.c.0.s8 %v875
        %v877 = vlaneseq
        %v878 = vshrl.u32 %v877, 7
        %v879 = vsub.s32 %v876, %v878
        %v880 = vrot.slane %v872, %v879
        %v882 = vunpack.c.l.s4 1983009808
        %v883 = vunpack.c.0.s8 %v882
        %v884 = vlaneseq
        %v885 = vshrl.u32 %v884, 7
        %v886 = vsub.s32 %v883, %v885
        %v887 = vrot.slane %v873, %v886
        %v888 = vcombine.low %v864, %v880
        %v889 = vcombine.high %v864, %v880
        %v891 = vunpack.c.l.s4 1934713408
        %v892 = vunpack.c.0.s8 %v891
        %v893 = vlaneseq
        %v894 = vshrl.u32 %v893, 7
        %v895 = vsub.s32 %v892, %v894
        %v896 = vrot.slane %v888, %v895
        %v898 = vunpack.c.l.s4 1934713408
        %v899 = vunpack.c.0.s8 %v898
        %v900 = vlaneseq
        %v901 = vshrl.u32 %v900, 7
        %v902 = vsub.s32 %v899, %v901
        %v903 = vrot.slane %v889, %v902
        %v904 = vcombine.low %v871, %v887
        %v905 = vcombine.high %v871, %v887
        %v907 = vunpack.c.l.s4 1934713408
        %v908 = vunpack.c.0.s8 %v907
        %v909 = vlaneseq
        %v910 = vshrl.u32 %v909, 7
        %v911 = vsub.s32 %v908, %v910
        %v912 = vrot.slane %v904, %v911
        %v914 = vunpack.c.l.s4 1934713408
        %v915 = vunpack.c.0.s8 %v914
        %v916 = vlaneseq
        %v917 = vshrl.u32 %v916, 7
        %v918 = vsub.s32 %v915, %v917
        %v919 = vrot.slane %v905, %v918
        %v920 = vcombine.high %v896, 0.0
        %v921 = vcombine.high %v903, 0.0
        %v922 = vcombine.high %v912, 0.0
        %v923 = vcombine.high %v919, 0.0
        %v924 = vcombine.low %v896, %v903
        %v926 = vunpack.c.l.s4 1983009808
        %v927 = vunpack.c.0.s8 %v926
        %v928 = vlaneseq
        %v929 = vshrl.u32 %v928, 7
        %v930 = vsub.s32 %v927, %v929
        %v931 = vrot.slane %v924, %v930
        %v932 = vcombine.low %v920, %v921
        %v934 = vunpack.c.l.s4 1983009808
        %v935 = vunpack.c.0.s8 %v934
        %v936 = vlaneseq
        %v937 = vshrl.u32 %v936, 7
        %v938 = vsub.s32 %v935, %v937
        %v939 = vrot.slane %v932, %v938
        %v940 = vcombine.low %v912, %v919
        %v942 = vunpack.c.l.s4 1983009808
        %v943 = vunpack.c.0.s8 %v942
        %v944 = vlaneseq
        %v945 = vshrl.u32 %v944, 7
        %v946 = vsub.s32 %v943, %v945
        %v947 = vrot.slane %v940, %v946
        %v948 = vcombine.low %v922, %v923
        %v950 = vunpack.c.l.s4 1983009808
        %v951 = vunpack.c.0.s8 %v950
        %v952 = vlaneseq
        %v953 = vshrl.u32 %v952, 7
        %v954 = vsub.s32 %v951, %v953
        %v955 = vrot.slane %v948, %v954
        %v956 = vcombine.low %v931, %v939
        %v957 = vcombine.high %v931, %v939
        %v959 = vunpack.c.l.s4 1934713408
        %v960 = vunpack.c.0.s8 %v959
        %v961 = vlaneseq
        %v962 = vshrl.u32 %v961, 7
        %v963 = vsub.s32 %v960, %v962
        %v964 = vrot.slane %v956, %v963
        %v966 = vunpack.c.l.s4 1934713408
        %v967 = vunpack.c.0.s8 %v966
        %v968 = vlaneseq
        %v969 = vshrl.u32 %v968, 7
        %v970 = vsub.s32 %v967, %v969
        %v971 = vrot.slane %v957, %v970
        %v972 = vcombine.low %v947, %v955
        %v973 = vcombine.high %v947, %v955
        %v975 = vunpack.c.l.s4 1934713408
        %v976 = vunpack.c.0.s8 %v975
        %v977 = vlaneseq
        %v978 = vshrl.u32 %v977, 7
        %v979 = vsub.s32 %v976, %v978
        %v980 = vrot.slane %v972, %v979
        %v982 = vunpack.c.l.s4 1934713408
        %v983 = vunpack.c.0.s8 %v982
        %v984 = vlaneseq
        %v985 = vshrl.u32 %v984, 7
        %v986 = vsub.s32 %v983, %v985
        %v987 = vrot.slane %v973, %v986
        %v988 = vcombine.low %v964, %v980
        %v989 = vcombine.high %v964, %v980
        %v990 = vcombine.low %v971, %v987
        %v991 = vcombine.high %v971, %v987
        %v992 = vpack.c.bf16 %v988, %v988
        %v993 = vpack.c.bf16 %v989, %v989
        %v994 = vpack.c.bf16 %v990, %v990
        %v995 = vpack.c.bf16 %v991, %v991
        %997 = vrot.lane.b32.xlu0 %v691, 120
        %v998 = vpop.permute.xlu0 %997
        %1000 = vrot.lane.b32.xlu0 %v691, 112
        %v1001 = vpop.permute.xlu0 %1000
        %1003 = vrot.lane.b32.xlu0 %v691, 104
        %v1004 = vpop.permute.xlu0 %1003
        %v1006 = vcombine.low %v691, %v1001
        %v1007 = vcombine.high %v691, %v1001
        %v1009 = vunpack.c.l.s4 1983009808
        %v1010 = vunpack.c.0.s8 %v1009
        %v1011 = vlaneseq
        %v1012 = vshrl.u32 %v1011, 7
        %v1013 = vsub.s32 %v1010, %v1012
        %v1014 = vrot.slane %v1006, %v1013
        %v1016 = vunpack.c.l.s4 1983009808
        %v1017 = vunpack.c.0.s8 %v1016
        %v1018 = vlaneseq
        %v1019 = vshrl.u32 %v1018, 7
        %v1020 = vsub.s32 %v1017, %v1019
        %v1021 = vrot.slane %v1007, %v1020
        %v1022 = vcombine.low %v998, %v1004
        %v1023 = vcombine.high %v998, %v1004
        %v1025 = vunpack.c.l.s4 1983009808
        %v1026 = vunpack.c.0.s8 %v1025
        %v1027 = vlaneseq
        %v1028 = vshrl.u32 %v1027, 7
        %v1029 = vsub.s32 %v1026, %v1028
        %v1030 = vrot.slane %v1022, %v1029
        %v1032 = vunpack.c.l.s4 1983009808
        %v1033 = vunpack.c.0.s8 %v1032
        %v1034 = vlaneseq
        %v1035 = vshrl.u32 %v1034, 7
        %v1036 = vsub.s32 %v1033, %v1035
        %v1037 = vrot.slane %v1023, %v1036
        %v1038 = vcombine.low %v1014, %v1030
        %v1039 = vcombine.high %v1014, %v1030
        %v1041 = vunpack.c.l.s4 1934713408
        %v1042 = vunpack.c.0.s8 %v1041
        %v1043 = vlaneseq
        %v1044 = vshrl.u32 %v1043, 7
        %v1045 = vsub.s32 %v1042, %v1044
        %v1046 = vrot.slane %v1038, %v1045
        %v1048 = vunpack.c.l.s4 1934713408
        %v1049 = vunpack.c.0.s8 %v1048
        %v1050 = vlaneseq
        %v1051 = vshrl.u32 %v1050, 7
        %v1052 = vsub.s32 %v1049, %v1051
        %v1053 = vrot.slane %v1039, %v1052
        %v1054 = vcombine.low %v1021, %v1037
        %v1055 = vcombine.high %v1021, %v1037
        %v1057 = vunpack.c.l.s4 1934713408
        %v1058 = vunpack.c.0.s8 %v1057
        %v1059 = vlaneseq
        %v1060 = vshrl.u32 %v1059, 7
        %v1061 = vsub.s32 %v1058, %v1060
        %v1062 = vrot.slane %v1054, %v1061
        %v1064 = vunpack.c.l.s4 1934713408
        %v1065 = vunpack.c.0.s8 %v1064
        %v1066 = vlaneseq
        %v1067 = vshrl.u32 %v1066, 7
        %v1068 = vsub.s32 %v1065, %v1067
        %v1069 = vrot.slane %v1055, %v1068
        %v1070 = vcombine.high %v1046, 0.0
        %v1071 = vcombine.high %v1053, 0.0
        %v1072 = vcombine.high %v1062, 0.0
        %v1073 = vcombine.high %v1069, 0.0
        %v1074 = vcombine.low %v1046, %v1053
        %v1076 = vunpack.c.l.s4 1983009808
        %v1077 = vunpack.c.0.s8 %v1076
        %v1078 = vlaneseq
        %v1079 = vshrl.u32 %v1078, 7
        %v1080 = vsub.s32 %v1077, %v1079
        %v1081 = vrot.slane %v1074, %v1080
        %v1082 = vcombine.low %v1070, %v1071
        %v1084 = vunpack.c.l.s4 1983009808
        %v1085 = vunpack.c.0.s8 %v1084
        %v1086 = vlaneseq
        %v1087 = vshrl.u32 %v1086, 7
        %v1088 = vsub.s32 %v1085, %v1087
        %v1089 = vrot.slane %v1082, %v1088
        %v1090 = vcombine.low %v1062, %v1069
        %v1092 = vunpack.c.l.s4 1983009808
        %v1093 = vunpack.c.0.s8 %v1092
        %v1094 = vlaneseq
        %v1095 = vshrl.u32 %v1094, 7
        %v1096 = vsub.s32 %v1093, %v1095
        %v1097 = vrot.slane %v1090, %v1096
        %v1098 = vcombine.low %v1072, %v1073
        %v1100 = vunpack.c.l.s4 1983009808
        %v1101 = vunpack.c.0.s8 %v1100
        %v1102 = vlaneseq
        %v1103 = vshrl.u32 %v1102, 7
        %v1104 = vsub.s32 %v1101, %v1103
        %v1105 = vrot.slane %v1098, %v1104
        %v1106 = vcombine.low %v1081, %v1089
        %v1107 = vcombine.high %v1081, %v1089
        %v1109 = vunpack.c.l.s4 1934713408
        %v1110 = vunpack.c.0.s8 %v1109
        %v1111 = vlaneseq
        %v1112 = vshrl.u32 %v1111, 7
        %v1113 = vsub.s32 %v1110, %v1112
        %v1114 = vrot.slane %v1106, %v1113
        %v1116 = vunpack.c.l.s4 1934713408
        %v1117 = vunpack.c.0.s8 %v1116
        %v1118 = vlaneseq
        %v1119 = vshrl.u32 %v1118, 7
        %v1120 = vsub.s32 %v1117, %v1119
        %v1121 = vrot.slane %v1107, %v1120
        %v1122 = vcombine.low %v1097, %v1105
        %v1123 = vcombine.high %v1097, %v1105
        %v1125 = vunpack.c.l.s4 1934713408
        %v1126 = vunpack.c.0.s8 %v1125
        %v1127 = vlaneseq
        %v1128 = vshrl.u32 %v1127, 7
        %v1129 = vsub.s32 %v1126, %v1128
        %v1130 = vrot.slane %v1122, %v1129
        %v1132 = vunpack.c.l.s4 1934713408
        %v1133 = vunpack.c.0.s8 %v1132
        %v1134 = vlaneseq
        %v1135 = vshrl.u32 %v1134, 7
        %v1136 = vsub.s32 %v1133, %v1135
        %v1137 = vrot.slane %v1123, %v1136
        %v1138 = vcombine.low %v1114, %v1130
        %v1139 = vcombine.high %v1114, %v1130
        %v1140 = vcombine.low %v1121, %v1137
        %v1141 = vcombine.high %v1121, %v1137
        %v1142 = vpack.c.bf16 %v1138, %v1138
        %v1143 = vpack.c.bf16 %v1139, %v1139
        %v1144 = vpack.c.bf16 %v1140, %v1140
        %v1145 = vpack.c.bf16 %v1141, %v1141
        %vm1146 = vcmask 64512
        %v1148 = vsel %vm1146, %v842, 0
        %v1151 = vsel %vm1146, %v992, 0
        %1153 = vmatprep.subr.bf16.mxu0 0
        %1154 = vmatpush1.bf16.xpose.msra.mxu0 0
        %1155 = vmatprep.subr.bf16.mxu0 0
        %1156 = vmatpush1.bf16.xpose.msra.mxu0 0
        %1157 = vmatprep.subr.bf16.mxu0 0
        %1158 = vmatpush1.bf16.xpose.msra.mxu0 0
        %1159 = vmatprep.subr.bf16.mxu0 0
        %1160 = vmatpush1.bf16.xpose.msra.mxu0 0
        %1161 = vmatprep.subr.bf16.mxu0 0
        %1162 = vmatpush1.bf16.xpose.msra.mxu0 0
        %1163 = vmatprep.subr.bf16.mxu0 0
        %1164 = vmatpush1.bf16.xpose.msra.mxu0 0
        %1165 = vmatprep.subr.bf16.mxu0 0
        %1166 = vmatpush1.bf16.xpose.msra.mxu0 0
        %1167 = vmatprep.subr.bf16.mxu0 0
        %1168 = vmatpush1.bf16.xpose.msra.mxu0 %v1151
        %1169 = vmatprep.subr.bf16.mxu0 0
        %1170 = vmatpush2.bf16.xpose.msra.mxu0 0
        %1171 = vmatprep.subr.bf16.mxu0 0
        %1172 = vmatpush2.bf16.xpose.msra.mxu0 0
        %1173 = vmatprep.subr.bf16.mxu0 0
        %1174 = vmatpush2.bf16.xpose.msra.mxu0 0
        %1175 = vmatprep.subr.bf16.mxu0 0
        %1176 = vmatpush2.bf16.xpose.msra.mxu0 0
        %1177 = vmatprep.subr.bf16.mxu0 0
        %1178 = vmatpush2.bf16.xpose.msra.mxu0 0
        %1179 = vmatprep.subr.bf16.mxu0 0
        %1180 = vmatpush2.bf16.xpose.msra.mxu0 0
        %1181 = vmatprep.subr.bf16.mxu0 0
        %1182 = vmatpush2.bf16.xpose.msra.mxu0 0
        %1183 = vmatprep.subr.bf16.mxu0 0
        %1184 = vmatpush2.bf16.xpose.msra.mxu0 0
        %1185 = vmatprep.mubr.bf16.mxu0 0
        %1186 = vmatmul.mubr.bf16.gmra.mxu0 %v1148
        %v1187 = vpop.f32.mrf.mxu0
        %v1188 = vadd.f32 0.0, %v1187
        %v1189 = vpop.f32.mrf.mxu0
        %v1190 = vpop.f32.mrf.mxu0
        %v1191 = vpop.f32.mrf.mxu0
        %1192 = vdwg.mxu0
        %v1194 = vsel %vm1146, %v843, 0
        %v1197 = vsel %vm1146, %v993, 0
        %1199 = vmatprep.subr.bf16.mxu0 0
        %1200 = vmatpush1.bf16.xpose.msra.mxu0 0
        %1201 = vmatprep.subr.bf16.mxu0 0
        %1202 = vmatpush1.bf16.xpose.msra.mxu0 0
        %1203 = vmatprep.subr.bf16.mxu0 0
        %1204 = vmatpush1.bf16.xpose.msra.mxu0 0
        %1205 = vmatprep.subr.bf16.mxu0 0
        %1206 = vmatpush1.bf16.xpose.msra.mxu0 0
        %1207 = vmatprep.subr.bf16.mxu0 0
        %1208 = vmatpush1.bf16.xpose.msra.mxu0 0
        %1209 = vmatprep.subr.bf16.mxu0 0
        %1210 = vmatpush1.bf16.xpose.msra.mxu0 0
        %1211 = vmatprep.subr.bf16.mxu0 0
        %1212 = vmatpush1.bf16.xpose.msra.mxu0 0
        %1213 = vmatprep.subr.bf16.mxu0 0
        %1214 = vmatpush1.bf16.xpose.msra.mxu0 %v1197
        %1215 = vmatprep.subr.bf16.mxu0 0
        %1216 = vmatpush2.bf16.xpose.msra.mxu0 0
        %1217 = vmatprep.subr.bf16.mxu0 0
        %1218 = vmatpush2.bf16.xpose.msra.mxu0 0
        %1219 = vmatprep.subr.bf16.mxu0 0
        %1220 = vmatpush2.bf16.xpose.msra.mxu0 0
        %1221 = vmatprep.subr.bf16.mxu0 0
        %1222 = vmatpush2.bf16.xpose.msra.mxu0 0
        %1223 = vmatprep.subr.bf16.mxu0 0
        %1224 = vmatpush2.bf16.xpose.msra.mxu0 0
        %1225 = vmatprep.subr.bf16.mxu0 0
        %1226 = vmatpush2.bf16.xpose.msra.mxu0 0
        %1227 = vmatprep.subr.bf16.mxu0 0
        %1228 = vmatpush2.bf16.xpose.msra.mxu0 0
        %1229 = vmatprep.subr.bf16.mxu0 0
        %1230 = vmatpush2.bf16.xpose.msra.mxu0 0
        %1231 = vmatprep.mubr.bf16.mxu0 0
        %1232 = vmatmul.mubr.bf16.gmra.mxu0 %v1194
        %v1233 = vpop.f32.mrf.mxu0
        %v1234 = vadd.f32 0.0, %v1233
        %v1235 = vpop.f32.mrf.mxu0
        %v1236 = vpop.f32.mrf.mxu0
        %v1237 = vpop.f32.mrf.mxu0
        %1238 = vdwg.mxu0
        %v1240 = vsel %vm1146, %v844, 0
        %v1243 = vsel %vm1146, %v994, 0
        %1245 = vmatprep.subr.bf16.mxu0 0
        %1246 = vmatpush1.bf16.xpose.msra.mxu0 0
        %1247 = vmatprep.subr.bf16.mxu0 0
        %1248 = vmatpush1.bf16.xpose.msra.mxu0 0
        %1249 = vmatprep.subr.bf16.mxu0 0
        %1250 = vmatpush1.bf16.xpose.msra.mxu0 0
        %1251 = vmatprep.subr.bf16.mxu0 0
        %1252 = vmatpush1.bf16.xpose.msra.mxu0 0
        %1253 = vmatprep.subr.bf16.mxu0 0
        %1254 = vmatpush1.bf16.xpose.msra.mxu0 0
        %1255 = vmatprep.subr.bf16.mxu0 0
        %1256 = vmatpush1.bf16.xpose.msra.mxu0 0
        %1257 = vmatprep.subr.bf16.mxu0 0
        %1258 = vmatpush1.bf16.xpose.msra.mxu0 0
        %1259 = vmatprep.subr.bf16.mxu0 0
        %1260 = vmatpush1.bf16.xpose.msra.mxu0 %v1243
        %1261 = vmatprep.subr.bf16.mxu0 0
        %1262 = vmatpush2.bf16.xpose.msra.mxu0 0
        %1263 = vmatprep.subr.bf16.mxu0 0
        %1264 = vmatpush2.bf16.xpose.msra.mxu0 0
        %1265 = vmatprep.subr.bf16.mxu0 0
        %1266 = vmatpush2.bf16.xpose.msra.mxu0 0
        %1267 = vmatprep.subr.bf16.mxu0 0
        %1268 = vmatpush2.bf16.xpose.msra.mxu0 0
        %1269 = vmatprep.subr.bf16.mxu0 0
        %1270 = vmatpush2.bf16.xpose.msra.mxu0 0
        %1271 = vmatprep.subr.bf16.mxu0 0
        %1272 = vmatpush2.bf16.xpose.msra.mxu0 0
        %1273 = vmatprep.subr.bf16.mxu0 0
        %1274 = vmatpush2.bf16.xpose.msra.mxu0 0
        %1275 = vmatprep.subr.bf16.mxu0 0
        %1276 = vmatpush2.bf16.xpose.msra.mxu0 0
        %1277 = vmatprep.mubr.bf16.mxu0 0
        %1278 = vmatmul.mubr.bf16.gmra.mxu0 %v1240
        %v1279 = vpop.f32.mrf.mxu0
        %v1280 = vadd.f32 0.0, %v1279
        %v1281 = vpop.f32.mrf.mxu0
        %v1282 = vpop.f32.mrf.mxu0
        %v1283 = vpop.f32.mrf.mxu0
        %1284 = vdwg.mxu0
        %v1286 = vsel %vm1146, %v845, 0
        %v1289 = vsel %vm1146, %v995, 0
        %1291 = vmatprep.subr.bf16.mxu0 0
        %1292 = vmatpush1.bf16.xpose.msra.mxu0 0
        %1293 = vmatprep.subr.bf16.mxu0 0
        %1294 = vmatpush1.bf16.xpose.msra.mxu0 0
        %1295 = vmatprep.subr.bf16.mxu0 0
        %1296 = vmatpush1.bf16.xpose.msra.mxu0 0
        %1297 = vmatprep.subr.bf16.mxu0 0
        %1298 = vmatpush1.bf16.xpose.msra.mxu0 0
        %1299 = vmatprep.subr.bf16.mxu0 0
        %1300 = vmatpush1.bf16.xpose.msra.mxu0 0
        %1301 = vmatprep.subr.bf16.mxu0 0
        %1302 = vmatpush1.bf16.xpose.msra.mxu0 0
        %1303 = vmatprep.subr.bf16.mxu0 0
        %1304 = vmatpush1.bf16.xpose.msra.mxu0 0
        %1305 = vmatprep.subr.bf16.mxu0 0
        %1306 = vmatpush1.bf16.xpose.msra.mxu0 %v1289
        %1307 = vmatprep.subr.bf16.mxu0 0
        %1308 = vmatpush2.bf16.xpose.msra.mxu0 0
        %1309 = vmatprep.subr.bf16.mxu0 0
        %1310 = vmatpush2.bf16.xpose.msra.mxu0 0
        %1311 = vmatprep.subr.bf16.mxu0 0
        %1312 = vmatpush2.bf16.xpose.msra.mxu0 0
        %1313 = vmatprep.subr.bf16.mxu0 0
        %1314 = vmatpush2.bf16.xpose.msra.mxu0 0
        %1315 = vmatprep.subr.bf16.mxu0 0
        %1316 = vmatpush2.bf16.xpose.msra.mxu0 0
        %1317 = vmatprep.subr.bf16.mxu0 0
        %1318 = vmatpush2.bf16.xpose.msra.mxu0 0
        %1319 = vmatprep.subr.bf16.mxu0 0
        %1320 = vmatpush2.bf16.xpose.msra.mxu0 0
        %1321 = vmatprep.subr.bf16.mxu0 0
        %1322 = vmatpush2.bf16.xpose.msra.mxu0 0
        %1323 = vmatprep.mubr.bf16.mxu0 0
        %1324 = vmatmul.mubr.bf16.gmra.mxu0 %v1286
        %v1325 = vpop.f32.mrf.mxu0
        %v1326 = vadd.f32 0.0, %v1325
        %v1327 = vpop.f32.mrf.mxu0
        %v1328 = vpop.f32.mrf.mxu0
        %v1329 = vpop.f32.mrf.mxu0
        %1330 = vdwg.mxu0
        %v1331 = vsel %vm1146, %v1188, -inf
        %1332 = vmax.xlane.f32.xlu0 %v1331
        %v1333 = vpop.xlane.xlu0 %1332
        %v1334 = vsel %vm1146, %v1234, -inf
        %1335 = vmax.xlane.f32.xlu0 %v1334
        %v1336 = vpop.xlane.xlu0 %1335
        %v1337 = vsel %vm1146, %v1280, -inf
        %1338 = vmax.xlane.f32.xlu0 %v1337
        %v1339 = vpop.xlane.xlu0 %1338
        %v1340 = vsel %vm1146, %v1326, -inf
        %1341 = vmax.xlane.f32.xlu0 %v1340
        %v1342 = vpop.xlane.xlu0 %1341
        %v1343 = vsub.f32 %v1188, %v1333
        %v1344 = vsub.f32 %v1234, %v1336
        %v1345 = vsub.f32 %v1280, %v1339
        %v1346 = vsub.f32 %v1326, %v1342
        %v1347 = vmul.f32 %v1343, 1.442695
        %v1348 = vpow.pop %v1347
        %v1349 = vmul.f32 %v1344, 1.442695
        %v1350 = vpow.pop %v1349
        %v1351 = vmul.f32 %v1345, 1.442695
        %v1352 = vpow.pop %v1351
        %v1353 = vmul.f32 %v1346, 1.442695
        %v1354 = vpow.pop %v1353
        %v1355 = vsel %vm1146, %v1348, 0.0
        %1356 = vadd.xlane.f32.xlu0 %v1355
        %v1357 = vpop.xlane.xlu0 %1356
        %v1358 = vsel %vm1146, %v1350, 0.0
        %1359 = vadd.xlane.f32.xlu0 %v1358
        %v1360 = vpop.xlane.xlu0 %1359
        %v1361 = vsel %vm1146, %v1352, 0.0
        %1362 = vadd.xlane.f32.xlu0 %v1361
        %v1363 = vpop.xlane.xlu0 %1362
        %v1364 = vsel %vm1146, %v1354, 0.0
        %1365 = vadd.xlane.f32.xlu0 %v1364
        %v1366 = vpop.xlane.xlu0 %1365
        %v1367 = vrcp.pop %v1357
        %v1368 = vrcp.pop %v1360
        %v1369 = vrcp.pop %v1363
        %v1370 = vrcp.pop %v1366
        %v1371 = vmul.f32 %v1348, %v1367
        %v1372 = vmul.f32 %v1350, %v1368
        %v1373 = vmul.f32 %v1352, %v1369
        %v1374 = vmul.f32 %v1354, %v1370
        %v1375 = vpack.c.bf16 %v1371, %v1371
        %v1376 = vpack.c.bf16 %v1372, %v1372
        %v1377 = vpack.c.bf16 %v1373, %v1373
        %v1378 = vpack.c.bf16 %v1374, %v1374
        %v1380 = vsel %vm1146, %v1375, 0
        %vm1382 = vcmask 1043456
        %v1384 = vsel %vm1382, %v1142, 0
        %1386 = vmatprep.subr.bf16.mxu0 0
        %1387 = vmatpush1.bf16.msra.mxu0 0
        %1388 = vmatprep.subr.bf16.mxu0 0
        %1389 = vmatpush1.bf16.msra.mxu0 0
        %1390 = vmatprep.subr.bf16.mxu0 0
        %1391 = vmatpush1.bf16.msra.mxu0 0
        %1392 = vmatprep.subr.bf16.mxu0 0
        %1393 = vmatpush1.bf16.msra.mxu0 0
        %1394 = vmatprep.subr.bf16.mxu0 0
        %1395 = vmatpush1.bf16.msra.mxu0 0
        %1396 = vmatprep.subr.bf16.mxu0 0
        %1397 = vmatpush1.bf16.msra.mxu0 0
        %1398 = vmatprep.subr.bf16.mxu0 0
        %1399 = vmatpush1.bf16.msra.mxu0 0
        %1400 = vmatprep.subr.bf16.mxu0 0
        %1401 = vmatpush1.bf16.msra.mxu0 %v1384
        %1402 = vmatprep.subr.bf16.mxu0 0
        %1403 = vmatpush2.bf16.msra.mxu0 0
        %1404 = vmatprep.subr.bf16.mxu0 0
        %1405 = vmatpush2.bf16.msra.mxu0 0
        %1406 = vmatprep.subr.bf16.mxu0 0
        %1407 = vmatpush2.bf16.msra.mxu0 0
        %1408 = vmatprep.subr.bf16.mxu0 0
        %1409 = vmatpush2.bf16.msra.mxu0 0
        %1410 = vmatprep.subr.bf16.mxu0 0
        %1411 = vmatpush2.bf16.msra.mxu0 0
        %1412 = vmatprep.subr.bf16.mxu0 0
        %1413 = vmatpush2.bf16.msra.mxu0 0
        %1414 = vmatprep.subr.bf16.mxu0 0
        %1415 = vmatpush2.bf16.msra.mxu0 0
        %1416 = vmatprep.subr.bf16.mxu0 0
        %1417 = vmatpush2.bf16.msra.mxu0 0
        %1418 = vmatprep.mubr.bf16.mxu0 0
        %1419 = vmatmul.mubr.bf16.gmra.mxu0 %v1380
        %v1420 = vpop.f32.mrf.mxu0
        %v1421 = vadd.f32 0.0, %v1420
        %v1422 = vpop.f32.mrf.mxu0
        %v1423 = vpop.f32.mrf.mxu0
        %v1424 = vpop.f32.mrf.mxu0
        %1425 = vdwg.mxu0
        %v1427 = vsel %vm1146, %v1376, 0
        %v1430 = vsel %vm1382, %v1143, 0
        %1432 = vmatprep.subr.bf16.mxu0 0
        %1433 = vmatpush1.bf16.msra.mxu0 0
        %1434 = vmatprep.subr.bf16.mxu0 0
        %1435 = vmatpush1.bf16.msra.mxu0 0
        %1436 = vmatprep.subr.bf16.mxu0 0
        %1437 = vmatpush1.bf16.msra.mxu0 0
        %1438 = vmatprep.subr.bf16.mxu0 0
        %1439 = vmatpush1.bf16.msra.mxu0 0
        %1440 = vmatprep.subr.bf16.mxu0 0
        %1441 = vmatpush1.bf16.msra.mxu0 0
        %1442 = vmatprep.subr.bf16.mxu0 0
        %1443 = vmatpush1.bf16.msra.mxu0 0
        %1444 = vmatprep.subr.bf16.mxu0 0
        %1445 = vmatpush1.bf16.msra.mxu0 0
        %1446 = vmatprep.subr.bf16.mxu0 0
        %1447 = vmatpush1.bf16.msra.mxu0 %v1430
        %1448 = vmatprep.subr.bf16.mxu0 0
        %1449 = vmatpush2.bf16.msra.mxu0 0
        %1450 = vmatprep.subr.bf16.mxu0 0
        %1451 = vmatpush2.bf16.msra.mxu0 0
        %1452 = vmatprep.subr.bf16.mxu0 0
        %1453 = vmatpush2.bf16.msra.mxu0 0
        %1454 = vmatprep.subr.bf16.mxu0 0
        %1455 = vmatpush2.bf16.msra.mxu0 0
        %1456 = vmatprep.subr.bf16.mxu0 0
        %1457 = vmatpush2.bf16.msra.mxu0 0
        %1458 = vmatprep.subr.bf16.mxu0 0
        %1459 = vmatpush2.bf16.msra.mxu0 0
        %1460 = vmatprep.subr.bf16.mxu0 0
        %1461 = vmatpush2.bf16.msra.mxu0 0
        %1462 = vmatprep.subr.bf16.mxu0 0
        %1463 = vmatpush2.bf16.msra.mxu0 0
        %1464 = vmatprep.mubr.bf16.mxu0 0
        %1465 = vmatmul.mubr.bf16.gmra.mxu0 %v1427
        %v1466 = vpop.f32.mrf.mxu0
        %v1467 = vadd.f32 0.0, %v1466
        %v1468 = vpop.f32.mrf.mxu0
        %v1469 = vpop.f32.mrf.mxu0
        %v1470 = vpop.f32.mrf.mxu0
        %1471 = vdwg.mxu0
        %v1473 = vsel %vm1146, %v1377, 0
        %v1476 = vsel %vm1382, %v1144, 0
        %1478 = vmatprep.subr.bf16.mxu0 0
        %1479 = vmatpush1.bf16.msra.mxu0 0
        %1480 = vmatprep.subr.bf16.mxu0 0
        %1481 = vmatpush1.bf16.msra.mxu0 0
        %1482 = vmatprep.subr.bf16.mxu0 0
        %1483 = vmatpush1.bf16.msra.mxu0 0
        %1484 = vmatprep.subr.bf16.mxu0 0
        %1485 = vmatpush1.bf16.msra.mxu0 0
        %1486 = vmatprep.subr.bf16.mxu0 0
        %1487 = vmatpush1.bf16.msra.mxu0 0
        %1488 = vmatprep.subr.bf16.mxu0 0
        %1489 = vmatpush1.bf16.msra.mxu0 0
        %1490 = vmatprep.subr.bf16.mxu0 0
        %1491 = vmatpush1.bf16.msra.mxu0 0
        %1492 = vmatprep.subr.bf16.mxu0 0
        %1493 = vmatpush1.bf16.msra.mxu0 %v1476
        %1494 = vmatprep.subr.bf16.mxu0 0
        %1495 = vmatpush2.bf16.msra.mxu0 0
        %1496 = vmatprep.subr.bf16.mxu0 0
        %1497 = vmatpush2.bf16.msra.mxu0 0
        %1498 = vmatprep.subr.bf16.mxu0 0
        %1499 = vmatpush2.bf16.msra.mxu0 0
        %1500 = vmatprep.subr.bf16.mxu0 0
        %1501 = vmatpush2.bf16.msra.mxu0 0
        %1502 = vmatprep.subr.bf16.mxu0 0
        %1503 = vmatpush2.bf16.msra.mxu0 0
        %1504 = vmatprep.subr.bf16.mxu0 0
        %1505 = vmatpush2.bf16.msra.mxu0 0
        %1506 = vmatprep.subr.bf16.mxu0 0
        %1507 = vmatpush2.bf16.msra.mxu0 0
        %1508 = vmatprep.subr.bf16.mxu0 0
        %1509 = vmatpush2.bf16.msra.mxu0 0
        %1510 = vmatprep.mubr.bf16.mxu0 0
        %1511 = vmatmul.mubr.bf16.gmra.mxu0 %v1473
        %v1512 = vpop.f32.mrf.mxu0
        %v1513 = vadd.f32 0.0, %v1512
        %v1514 = vpop.f32.mrf.mxu0
        %v1515 = vpop.f32.mrf.mxu0
        %v1516 = vpop.f32.mrf.mxu0
        %1517 = vdwg.mxu0
        %v1519 = vsel %vm1146, %v1378, 0
        %v1522 = vsel %vm1382, %v1145, 0
        %1524 = vmatprep.subr.bf16.mxu0 0
        %1525 = vmatpush1.bf16.msra.mxu0 0
        %1526 = vmatprep.subr.bf16.mxu0 0
        %1527 = vmatpush1.bf16.msra.mxu0 0
        %1528 = vmatprep.subr.bf16.mxu0 0
        %1529 = vmatpush1.bf16.msra.mxu0 0
        %1530 = vmatprep.subr.bf16.mxu0 0
        %1531 = vmatpush1.bf16.msra.mxu0 0
        %1532 = vmatprep.subr.bf16.mxu0 0
        %1533 = vmatpush1.bf16.msra.mxu0 0
        %1534 = vmatprep.subr.bf16.mxu0 0
        %1535 = vmatpush1.bf16.msra.mxu0 0
        %1536 = vmatprep.subr.bf16.mxu0 0
        %1537 = vmatpush1.bf16.msra.mxu0 0
        %1538 = vmatprep.subr.bf16.mxu0 0
        %1539 = vmatpush1.bf16.msra.mxu0 %v1522
        %1540 = vmatprep.subr.bf16.mxu0 0
        %1541 = vmatpush2.bf16.msra.mxu0 0
        %1542 = vmatprep.subr.bf16.mxu0 0
        %1543 = vmatpush2.bf16.msra.mxu0 0
        %1544 = vmatprep.subr.bf16.mxu0 0
        %1545 = vmatpush2.bf16.msra.mxu0 0
        %1546 = vmatprep.subr.bf16.mxu0 0
        %1547 = vmatpush2.bf16.msra.mxu0 0
        %1548 = vmatprep.subr.bf16.mxu0 0
        %1549 = vmatpush2.bf16.msra.mxu0 0
        %1550 = vmatprep.subr.bf16.mxu0 0
        %1551 = vmatpush2.bf16.msra.mxu0 0
        %1552 = vmatprep.subr.bf16.mxu0 0
        %1553 = vmatpush2.bf16.msra.mxu0 0
        %1554 = vmatprep.subr.bf16.mxu0 0
        %1555 = vmatpush2.bf16.msra.mxu0 0
        %1556 = vmatprep.mubr.bf16.mxu0 0
        %1557 = vmatmul.mubr.bf16.gmra.mxu0 %v1519
        %v1558 = vpop.f32.mrf.mxu0
        %v1559 = vadd.f32 0.0, %v1558
        %v1560 = vpop.f32.mrf.mxu0
        %v1561 = vpop.f32.mrf.mxu0
        %v1562 = vpop.f32.mrf.mxu0
        %1563 = vdwg.mxu0
        %v1564 = vcombine.low %v1421, %v1513
        %v1565 = vcombine.high %v1421, %v1513
        %v1567 = vunpack.c.l.s4 1983009808
        %v1568 = vunpack.c.0.s8 %v1567
        %v1569 = vlaneseq
        %v1570 = vshrl.u32 %v1569, 7
        %v1571 = vsub.s32 %v1568, %v1570
        %v1572 = vrot.slane %v1564, %v1571
        %v1574 = vunpack.c.l.s4 1983009808
        %v1575 = vunpack.c.0.s8 %v1574
        %v1576 = vlaneseq
        %v1577 = vshrl.u32 %v1576, 7
        %v1578 = vsub.s32 %v1575, %v1577
        %v1579 = vrot.slane %v1565, %v1578
        %v1580 = vcombine.low %v1467, %v1559
        %v1581 = vcombine.high %v1467, %v1559
        %v1583 = vunpack.c.l.s4 1983009808
        %v1584 = vunpack.c.0.s8 %v1583
        %v1585 = vlaneseq
        %v1586 = vshrl.u32 %v1585, 7
        %v1587 = vsub.s32 %v1584, %v1586
        %v1588 = vrot.slane %v1580, %v1587
        %v1590 = vunpack.c.l.s4 1983009808
        %v1591 = vunpack.c.0.s8 %v1590
        %v1592 = vlaneseq
        %v1593 = vshrl.u32 %v1592, 7
        %v1594 = vsub.s32 %v1591, %v1593
        %v1595 = vrot.slane %v1581, %v1594
        %v1596 = vcombine.low %v1572, %v1588
        %v1597 = vcombine.high %v1572, %v1588
        %v1599 = vunpack.c.l.s4 1934713408
        %v1600 = vunpack.c.0.s8 %v1599
        %v1601 = vlaneseq
        %v1602 = vshrl.u32 %v1601, 7
        %v1603 = vsub.s32 %v1600, %v1602
        %v1604 = vrot.slane %v1596, %v1603
        %v1606 = vunpack.c.l.s4 1934713408
        %v1607 = vunpack.c.0.s8 %v1606
        %v1608 = vlaneseq
        %v1609 = vshrl.u32 %v1608, 7
        %v1610 = vsub.s32 %v1607, %v1609
        %v1611 = vrot.slane %v1597, %v1610
        %v1612 = vcombine.low %v1579, %v1595
        %v1613 = vcombine.high %v1579, %v1595
        %v1615 = vunpack.c.l.s4 1934713408
        %v1616 = vunpack.c.0.s8 %v1615
        %v1617 = vlaneseq
        %v1618 = vshrl.u32 %v1617, 7
        %v1619 = vsub.s32 %v1616, %v1618
        %v1620 = vrot.slane %v1612, %v1619
        %v1622 = vunpack.c.l.s4 1934713408
        %v1623 = vunpack.c.0.s8 %v1622
        %v1624 = vlaneseq
        %v1625 = vshrl.u32 %v1624, 7
        %v1626 = vsub.s32 %v1623, %v1625
        %v1627 = vrot.slane %v1613, %v1626
        %v1628 = vcombine.high %v1604, 0.0
        %v1629 = vcombine.high %v1611, 0.0
        %v1630 = vcombine.high %v1620, 0.0
        %v1631 = vcombine.high %v1627, 0.0
        %v1632 = vcombine.low %v1604, %v1611
        %v1634 = vunpack.c.l.s4 1983009808
        %v1635 = vunpack.c.0.s8 %v1634
        %v1636 = vlaneseq
        %v1637 = vshrl.u32 %v1636, 7
        %v1638 = vsub.s32 %v1635, %v1637
        %v1639 = vrot.slane %v1632, %v1638
        %v1640 = vcombine.low %v1628, %v1629
        %v1642 = vunpack.c.l.s4 1983009808
        %v1643 = vunpack.c.0.s8 %v1642
        %v1644 = vlaneseq
        %v1645 = vshrl.u32 %v1644, 7
        %v1646 = vsub.s32 %v1643, %v1645
        %v1647 = vrot.slane %v1640, %v1646
        %v1648 = vcombine.low %v1620, %v1627
        %v1650 = vunpack.c.l.s4 1983009808
        %v1651 = vunpack.c.0.s8 %v1650
        %v1652 = vlaneseq
        %v1653 = vshrl.u32 %v1652, 7
        %v1654 = vsub.s32 %v1651, %v1653
        %v1655 = vrot.slane %v1648, %v1654
        %v1656 = vcombine.low %v1630, %v1631
        %v1658 = vunpack.c.l.s4 1983009808
        %v1659 = vunpack.c.0.s8 %v1658
        %v1660 = vlaneseq
        %v1661 = vshrl.u32 %v1660, 7
        %v1662 = vsub.s32 %v1659, %v1661
        %v1663 = vrot.slane %v1656, %v1662
        %v1664 = vcombine.low %v1639, %v1647
        %v1665 = vcombine.high %v1639, %v1647
        %v1667 = vunpack.c.l.s4 1934713408
        %v1668 = vunpack.c.0.s8 %v1667
        %v1669 = vlaneseq
        %v1670 = vshrl.u32 %v1669, 7
        %v1671 = vsub.s32 %v1668, %v1670
        %v1672 = vrot.slane %v1664, %v1671
        %v1674 = vunpack.c.l.s4 1934713408
        %v1675 = vunpack.c.0.s8 %v1674
        %v1676 = vlaneseq
        %v1677 = vshrl.u32 %v1676, 7
        %v1678 = vsub.s32 %v1675, %v1677
        %v1679 = vrot.slane %v1665, %v1678
        %v1680 = vcombine.low %v1655, %v1663
        %v1681 = vcombine.high %v1655, %v1663
        %v1683 = vunpack.c.l.s4 1934713408
        %v1684 = vunpack.c.0.s8 %v1683
        %v1685 = vlaneseq
        %v1686 = vshrl.u32 %v1685, 7
        %v1687 = vsub.s32 %v1684, %v1686
        %v1688 = vrot.slane %v1680, %v1687
        %v1690 = vunpack.c.l.s4 1934713408
        %v1691 = vunpack.c.0.s8 %v1690
        %v1692 = vlaneseq
        %v1693 = vshrl.u32 %v1692, 7
        %v1694 = vsub.s32 %v1691, %v1693
        %v1695 = vrot.slane %v1681, %v1694
        %v1696 = vcombine.low %v1672, %v1688
        %v1697 = vcombine.high %v1672, %v1688
        %v1698 = vcombine.low %v1679, %v1695
        %v1699 = vcombine.high %v1679, %v1695
        %1701 = vrot.lane.b32.xlu0 %v1697, 8
        %v1702 = vpop.permute.xlu0 %1701
        %1705 = vrot.lane.b32.xlu0 %v1698, 16
        %v1706 = vpop.permute.xlu0 %1705
        %1709 = vrot.lane.b32.xlu0 %v1699, 24
        %v1710 = vpop.permute.xlu0 %1709
        %v1712 = vsel %vm1146, %v1696, %v1702
        %vm1713 = vcmask 130048
        %v1714 = vsel %vm1713, %v1712, %v1706
        %vm1715 = vcmask 195584
        %v1716 = vsel %vm1715, %v1714, %v1710
        %v1717 = vpack.c.bf16 %v1716, %v1716
        %v1718 = vld [vmem:[%s6] sm:$0xf]
        %v1719 = vld [vmem:[%s6 + $0x4] sm:$0xf]
        %v1720 = vld [vmem:[%s6 + $0x8] sm:$0xf]
        %v1721 = vld [vmem:[%s6 + $0xc] sm:$0xf]
        %v1722 = vld [vmem:[%s7] sm:$0x1]
        %v1724 = vlaneseq
        %v1725 = vshrl.u32 %v1724, 7
        %v1726 = vsub.s32 0, %v1725
        %v1727 = vrot.slane %v1722, %v1726
        %v1733 = vunpack.c.l.b16 %v1718
        %v1734 = vunpack.c.l.b16 %v1719
        %v1735 = vunpack.c.l.b16 %v1720
        %v1736 = vunpack.c.l.b16 %v1721
        %v1737 = vpack.c.b16 %v1734, %v1733
        %v1738 = vpack.c.b16 %v1736, %v1735
        %v1742 = vsel %vm495, %v1717, 0
        %1744 = vmatprep.subr.bf16.mxu0 0
        %1745 = vmatpush1.bf16.msra.mxu0 0
        %1746 = vmatprep.subr.bf16.mxu0 0
        %1747 = vmatpush1.bf16.msra.mxu0 0
        %1748 = vmatprep.subr.bf16.mxu0 0
        %1749 = vmatpush1.bf16.msra.mxu0 0
        %1750 = vmatprep.subr.bf16.mxu0 0
        %1751 = vmatpush1.bf16.msra.mxu0 0
        %1752 = vmatprep.subr.bf16.mxu0 0
        %1753 = vmatpush1.bf16.msra.mxu0 0
        %1754 = vmatprep.subr.bf16.mxu0 0
        %1755 = vmatpush1.bf16.msra.mxu0 0
        %1756 = vmatprep.subr.bf16.mxu0 0
        %1757 = vmatpush1.bf16.msra.mxu0 %v1738
        %1758 = vmatprep.subr.bf16.mxu0 0
        %1759 = vmatpush1.bf16.msra.mxu0 %v1737
        %1760 = vmatprep.subr.bf16.mxu0 0
        %1761 = vmatpush2.bf16.msra.mxu0 0
        %1762 = vmatprep.subr.bf16.mxu0 0
        %1763 = vmatpush2.bf16.msra.mxu0 0
        %1764 = vmatprep.subr.bf16.mxu0 0
        %1765 = vmatpush2.bf16.msra.mxu0 0
        %1766 = vmatprep.subr.bf16.mxu0 0
        %1767 = vmatpush2.bf16.msra.mxu0 0
        %1768 = vmatprep.subr.bf16.mxu0 0
        %1769 = vmatpush2.bf16.msra.mxu0 0
        %1770 = vmatprep.subr.bf16.mxu0 0
        %1771 = vmatpush2.bf16.msra.mxu0 0
        %1772 = vmatprep.subr.bf16.mxu0 0
        %1773 = vmatpush2.bf16.msra.mxu0 0
        %1774 = vmatprep.subr.bf16.mxu0 0
        %1775 = vmatpush2.bf16.msra.mxu0 0
        %1776 = vmatprep.mubr.bf16.mxu0 0
        %1777 = vmatmul.mubr.bf16.gmra.mxu0 %v1742
        %v1778 = vpop.f32.mrf.mxu0
        %v1779 = vadd.f32 %v1727, %v1778
        %v1780 = vpop.f32.mrf.mxu0
        %v1781 = vpop.f32.mrf.mxu0
        %v1782 = vpop.f32.mrf.mxu0
        %1783 = vdwg.mxu0
        %v1784 = vadd.f32 %v492, %v1779
        %v1785 = vld [vmem:[%s8] sm:$0x1]
        %v1786 = vld [vmem:[%s9] sm:$0x1]
        %v1787 = vsel %vm495, %v1784, 0.0
        %1788 = vadd.xlane.f32.xlu0 %v1787
        %v1789 = vpop.xlane.xlu0 %1788
        %v1790 = vmul.f32 %v1789, %v499
        %v1791 = vsub.f32 %v1784, %v1790
        %v1792 = vmul.f32 %v1791, %v1791
        %v1793 = vsel %vm495, %v1792, 0.0
        %1794 = vadd.xlane.f32.xlu0 %v1793
        %v1795 = vpop.xlane.xlu0 %1794
        %v1796 = vmul.f32 %v1795, %v499
        %v1797 = vadd.f32 %v1796, 1e-05
        %v1798 = vrsqrt.pop %v1797
        %v1799 = vmul.f32 %v1791, %v1798
        %v1801 = vlaneseq
        %v1802 = vshrl.u32 %v1801, 7
        %v1803 = vsub.s32 0, %v1802
        %v1804 = vrot.slane %v1785, %v1803
        %v1806 = vmul.f32 %v1799, %v1804
        %v1808 = vlaneseq
        %v1809 = vshrl.u32 %v1808, 7
        %v1810 = vsub.s32 0, %v1809
        %v1811 = vrot.slane %v1786, %v1810
        %v1813 = vadd.f32 %v1806, %v1811
        %v1814 = vpack.c.bf16 %v1813, %v1813
        %v1815 = vld [vmem:[#allocation2] sm:$0xf]
        %v1816 = vld [vmem:[#allocation2 + $0x4] sm:$0xf]
        %v1817 = vld [vmem:[#allocation2 + $0x8] sm:$0xf]
        %v1818 = vld [vmem:[#allocation2 + $0xc] sm:$0xf]
        %v1819 = vld [vmem:[#allocation5] sm:$0x1]
        %v1821 = vlaneseq
        %v1822 = vshrl.u32 %v1821, 7
        %v1823 = vsub.s32 0, %v1822
        %v1824 = vrot.slane %v1819, %v1823
        %v1830 = vunpack.c.l.b16 %v1815
        %v1831 = vunpack.c.l.b16 %v1816
        %v1832 = vunpack.c.l.b16 %v1817
        %v1833 = vunpack.c.l.b16 %v1818
        %v1834 = vpack.c.b16 %v1831, %v1830
        %v1835 = vpack.c.b16 %v1833, %v1832
        %v1839 = vsel %vm495, %v1814, 0
        %1841 = vmatprep.subr.bf16.mxu0 0
        %1842 = vmatpush1.bf16.msra.mxu0 0
        %1843 = vmatprep.subr.bf16.mxu0 0
        %1844 = vmatpush1.bf16.msra.mxu0 0
        %1845 = vmatprep.subr.bf16.mxu0 0
        %1846 = vmatpush1.bf16.msra.mxu0 0
        %1847 = vmatprep.subr.bf16.mxu0 0
        %1848 = vmatpush1.bf16.msra.mxu0 0
        %1849 = vmatprep.subr.bf16.mxu0 0
        %1850 = vmatpush1.bf16.msra.mxu0 0
        %1851 = vmatprep.subr.bf16.mxu0 0
        %1852 = vmatpush1.bf16.msra.mxu0 0
        %1853 = vmatprep.subr.bf16.mxu0 0
        %1854 = vmatpush1.bf16.msra.mxu0 %v1835
        %1855 = vmatprep.subr.bf16.mxu0 0
        %1856 = vmatpush1.bf16.msra.mxu0 %v1834
        %1857 = vmatprep.subr.bf16.mxu0 0
        %1858 = vmatpush2.bf16.msra.mxu0 0
        %1859 = vmatprep.subr.bf16.mxu0 0
        %1860 = vmatpush2.bf16.msra.mxu0 0
        %1861 = vmatprep.subr.bf16.mxu0 0
        %1862 = vmatpush2.bf16.msra.mxu0 0
        %1863 = vmatprep.subr.bf16.mxu0 0
        %1864 = vmatpush2.bf16.msra.mxu0 0
        %1865 = vmatprep.subr.bf16.mxu0 0
        %1866 = vmatpush2.bf16.msra.mxu0 0
        %1867 = vmatprep.subr.bf16.mxu0 0
        %1868 = vmatpush2.bf16.msra.mxu0 0
        %1869 = vmatprep.subr.bf16.mxu0 0
        %1870 = vmatpush2.bf16.msra.mxu0 0
        %1871 = vmatprep.subr.bf16.mxu0 0
        %1872 = vmatpush2.bf16.msra.mxu0 0
        %1873 = vmatprep.mubr.bf16.mxu0 0
        %1874 = vmatmul.mubr.bf16.gmra.mxu0 %v1839
        %v1875 = vpop.f32.mrf.mxu0
        %v1876 = vadd.f32 %v1824, %v1875
        %v1877 = vpop.f32.mrf.mxu0
        %v1878 = vpop.f32.mrf.mxu0
        %v1879 = vpop.f32.mrf.mxu0
        %1880 = vdwg.mxu0
        %v1881 = vmul.f32 %v1876, 0.5
        %v1882 = vmul.f32 %v1876, 0.70710677
        %v1883 = vand.u32 2147483647, %v1882
        %v1884 = vmul.f32 %v1883, 0.3275911
        %v1885 = vadd.f32 %v1884, 1.0
        %v1886 = vrcp.pop %v1885
        %v1887 = vmul.f32 1.0, %v1886
        %v1888 = vmul.f32 %v1887, 1.0614054
        %v1889 = vadd.f32 %v1888, -1.4531521
        %v1890 = vmul.f32 %v1889, %v1887
        %v1891 = vadd.f32 %v1890, 1.4214138
        %v1892 = vmul.f32 %v1891, %v1887
        %v1893 = vadd.f32 %v1892, -0.28449672
        %v1894 = vmul.f32 %v1893, %v1887
        %v1895 = vadd.f32 %v1894, 0.2548296
        %v1896 = vmul.f32 %v1895, %v1887
        %v1897 = vsub.f32 0.0, %v1883
        %v1898 = vmul.f32 %v1897, %v1883
        %v1899 = vmul.f32 %v1898, 1.442695
        %v1900 = vpow.pop %v1899
        %v1901 = vmul.f32 %v1896, %v1900
        %v1902 = vsub.f32 1.0, %v1901
        %vm1903 = vcmp.ge.f32.partialorder %v1882, 0.0
        %v1904 = vsub.f32 0.0, %v1902
        %v1905 = vsel %vm1903, %v1902, %v1904
        %v1906 = vadd.f32 %v1905, 1.0
        %v1907 = vmul.f32 %v1881, %v1906
        %v1908 = vpack.c.bf16 %v1907, %v1907
        %v1909 = vld [vmem:[%s12] sm:$0xf]
        %v1910 = vld [vmem:[%s12 + $0x4] sm:$0xf]
        %v1911 = vld [vmem:[%s12 + $0x8] sm:$0xf]
        %v1912 = vld [vmem:[%s12 + $0xc] sm:$0xf]
        %v1913 = vld [vmem:[%s12 + $0x10] sm:$0xf]
        %v1914 = vld [vmem:[%s12 + $0x14] sm:$0xf]
        %v1915 = vld [vmem:[%s12 + $0x18] sm:$0xf]
        %v1916 = vld [vmem:[%s12 + $0x1c] sm:$0xf]
        %v1917 = vld [vmem:[%s12 + $0x20] sm:$0xf]
        %v1918 = vld [vmem:[%s12 + $0x24] sm:$0xf]
        %v1919 = vld [vmem:[%s12 + $0x28] sm:$0xf]
        %v1920 = vld [vmem:[%s12 + $0x2c] sm:$0xf]
        %v1921 = vld [vmem:[%s12 + $0x30] sm:$0xf]
        %v1922 = vld [vmem:[%s12 + $0x34] sm:$0xf]
        %v1923 = vld [vmem:[%s12 + $0x38] sm:$0xf]
        %v1924 = vld [vmem:[%s12 + $0x3c] sm:$0xf]
        %v1925 = vld [vmem:[%s13] sm:$0x1]
        %v1927 = vlaneseq
        %v1928 = vshrl.u32 %v1927, 7
        %v1929 = vsub.s32 0, %v1928
        %v1930 = vrot.slane %v1925, %v1929
        %v1948 = vunpack.c.l.b16 %v1909
        %v1949 = vunpack.c.l.b16 %v1910
        %v1950 = vunpack.c.l.b16 %v1911
        %v1951 = vunpack.c.l.b16 %v1912
        %v1952 = vunpack.c.l.b16 %v1913
        %v1953 = vunpack.c.l.b16 %v1914
        %v1954 = vunpack.c.l.b16 %v1915
        %v1955 = vunpack.c.l.b16 %v1916
        %v1956 = vunpack.c.l.b16 %v1917
        %v1957 = vunpack.c.l.b16 %v1918
        %v1958 = vunpack.c.l.b16 %v1919
        %v1959 = vunpack.c.l.b16 %v1920
        %v1960 = vunpack.c.l.b16 %v1921
        %v1961 = vunpack.c.l.b16 %v1922
        %v1962 = vunpack.c.l.b16 %v1923
        %v1963 = vunpack.c.l.b16 %v1924
        %v1964 = vpack.c.b16 %v1949, %v1948
        %v1965 = vpack.c.b16 %v1951, %v1950
        %v1966 = vpack.c.b16 %v1953, %v1952
        %v1967 = vpack.c.b16 %v1955, %v1954
        %v1968 = vpack.c.b16 %v1957, %v1956
        %v1969 = vpack.c.b16 %v1959, %v1958
        %v1970 = vpack.c.b16 %v1961, %v1960
        %v1971 = vpack.c.b16 %v1963, %v1962
        %1980 = vmatprep.subr.bf16.mxu0 0
        %1981 = vmatpush1.bf16.msra.mxu0 %v1971
        %1982 = vmatprep.subr.bf16.mxu0 0
        %1983 = vmatpush1.bf16.msra.mxu0 %v1970
        %1984 = vmatprep.subr.bf16.mxu0 0
        %1985 = vmatpush1.bf16.msra.mxu0 %v1969
        %1986 = vmatprep.subr.bf16.mxu0 0
        %1987 = vmatpush1.bf16.msra.mxu0 %v1968
        %1988 = vmatprep.subr.bf16.mxu0 0
        %1989 = vmatpush1.bf16.msra.mxu0 %v1967
        %1990 = vmatprep.subr.bf16.mxu0 0
        %1991 = vmatpush1.bf16.msra.mxu0 %v1966
        %1992 = vmatprep.subr.bf16.mxu0 0
        %1993 = vmatpush1.bf16.msra.mxu0 %v1965
        %1994 = vmatprep.subr.bf16.mxu0 0
        %1995 = vmatpush1.bf16.msra.mxu0 %v1964
        %1996 = vmatprep.subr.bf16.mxu0 0
        %1997 = vmatpush2.bf16.msra.mxu0 0
        %1998 = vmatprep.subr.bf16.mxu0 0
        %1999 = vmatpush2.bf16.msra.mxu0 0
        %2000 = vmatprep.subr.bf16.mxu0 0
        %2001 = vmatpush2.bf16.msra.mxu0 0
        %2002 = vmatprep.subr.bf16.mxu0 0
        %2003 = vmatpush2.bf16.msra.mxu0 0
        %2004 = vmatprep.subr.bf16.mxu0 0
        %2005 = vmatpush2.bf16.msra.mxu0 0
        %2006 = vmatprep.subr.bf16.mxu0 0
        %2007 = vmatpush2.bf16.msra.mxu0 0
        %2008 = vmatprep.subr.bf16.mxu0 0
        %2009 = vmatpush2.bf16.msra.mxu0 0
        %2010 = vmatprep.subr.bf16.mxu0 0
        %2011 = vmatpush2.bf16.msra.mxu0 0
        %2012 = vmatprep.mubr.bf16.mxu0 0
        %2013 = vmatmul.mubr.bf16.gmra.mxu0 %v1908
        %v2014 = vpop.f32.mrf.mxu0
        %v2015 = vadd.f32 %v1930, %v2014
        %v2016 = vpop.f32.mrf.mxu0
        %v2017 = vpop.f32.mrf.mxu0
        %v2018 = vpop.f32.mrf.mxu0
        %2019 = vdwg.mxu0
        %v2020 = vadd.f32 %v1784, %v2015
        %2021 = vst.msk [vmem:[%s486] sm:$0xff] %vm495, %v2020
        %s2022 = sand.u32 %s337, 1
        %s2023 = scalar_lea.sflag [#allocation4], %s2022
        %s2024 = sand.u32 %s337, 1
        %s2025 = smul.addr %s2024, 8
        %s2026 = scalar_lea.vmem [#allocation7], %s2025
        // Predicated region
        $region85: #{tpu_custom_call.1} parent=75 // pred_check
          %p2027 = pneg %p347
        $region86: #{tpu_custom_call.1} parent=75 // pred_check_branch
          %2029 = sbr.rel (%p2027) target = $region88
        $region87: #{tpu_custom_call.1} parent=75 // pred_region
          %s2031 = ssub.s32 128, 128
          %2032 = vsyncadd %s2023, %s2031
          %s2033 = smul.addr %s30, 128
          %s2034 = scalar_lea.hbm %s14, %s2033
          %s2036 = sshll.u32 %s2026, 4
          %s2037 = int_to_ptr.vmem [resolvable:$true] %s2036
          %2039 = dma.vmem_to_hbm [thread:$0]  %s2037, 128, %s2034, %s2023
        $region88: #{tpu_custom_call.1} parent=75 // pred_fallthru
          _
      $region76: #{tpu_custom_call.1} parent=5 // pred_fallthru
        _
      %p2040 = scmp.le.s32.totalorder 2, %s25
      // Predicated region
      $region89: #{tpu_custom_call.1} parent=5 // pred_check
        %p2041 = pneg %p2040
      $region90: #{tpu_custom_call.1} parent=5 // pred_check_branch
        %2043 = sbr.rel (%p2041) target = $region92
      $region91: #{tpu_custom_call.1} parent=5 // pred_region
        %s2044 = ssub.s32 %s25, 2
        // Predicated region
        $region93: #{tpu_custom_call.1} parent=91 // pred_check
          %p2045 = pneg %p353
        $region94: #{tpu_custom_call.1} parent=91 // pred_check_branch
          %2047 = sbr.rel (%p2045) target = $region96
        $region95: #{tpu_custom_call.1} parent=91 // pred_region
          %s2048 = sand.u32 %s338, 1
          %s2049 = scalar_lea.sflag [#allocation4], %s2048
          %s2050 = sand.u32 %s338, 1
          %s2051 = smul.addr %s2050, 8
          %s2052 = scalar_lea.vmem [#allocation7], %s2051
          %2053 = dma.done %s2049, 128
        $region96: #{tpu_custom_call.1} parent=91 // pred_fallthru
          _
      $region92: #{tpu_custom_call.1} parent=5 // pred_fallthru
        _
    $region6: #{tpu_custom_call.1} parent=1 // loop_footer
      %s29 = sadd.s32 1, %s25
    $region7: #{tpu_custom_call.1} parent=1 // loop_footer_branch
      %24 = sbr.rel target = $region3
    $region8: #{tpu_custom_call.1} parent=1 // loop_exit
      _
    %2054 = vsyncpa [#allocation3], 1
    %s2055 = scalar_lea.sflag [#allocation3], 1
    %2056 = vsyncpa %s2055, 1
    %2057 = vsyncpa [#allocation6], 1
    %2058 = vsyncpa [#allocation4], 1
    %s2059 = scalar_lea.sflag [#allocation4], 1
    %2060 = vsyncpa %s2059, 1

</llo_original>
